<compile_context>
chip_gen: v7x
topology: tpu7x:2x2x1
jax: 0.10.0
libtpu: 0.0.40
codegen_flags: <defaults>
</compile_context>

<pallas_src>
import functools

import jax
import jax.numpy as jnp
from jax.experimental import pallas as pl
from jax.experimental.pallas import tpu as pltpu


# --------------------------------------------------------------------------
# Kernel
# --------------------------------------------------------------------------
def _mlp_kernel(*refs, n_inputs):
    """One tile of gaussians through the 4-layer MLP + quaternion-normalize.

    refs layout:
      refs[0:n_inputs]               input feature tiles (tile, d_k)     f32
      refs[n_inputs:2*n_inputs]      matching row-blocks of W1 (d_k,128) bf16
      refs[2*n_inputs + 0..2]        W2 (128,64), W3 (64,64), W4 (64,8)  bf16
      refs[2*n_inputs + 3]           stacked biases (4, 128)             f32
      refs[2*n_inputs + 4]           output tile (tile, 8)               f32
    """
    in_refs = refs[:n_inputs]
    w1_refs = refs[n_inputs:2 * n_inputs]
    w2_ref, w3_ref, w4_ref, b_ref = refs[2 * n_inputs:2 * n_inputs + 4]
    out_ref = refs[2 * n_inputs + 4]

    f32 = jnp.float32
    bf16 = jnp.bfloat16

    def silu(z):  # f32 math; exp lands on the EUP
        return z * jax.nn.sigmoid(z)

    # ---- layer 1: sum of partial matmuls == matmul of the virtual concat ----
    z = b_ref[0:1, :].astype(f32)                                   # (1, 128) bias
    for x_ref, w_ref in zip(in_refs, w1_refs):
        z = z + jnp.dot(x_ref[...].astype(bf16), w_ref[...],
                        preferred_element_type=f32)
    h = silu(z).astype(bf16)

    # ---- layers 2..4 (scaling already folded into W4 / b4 wrapper-side) ----
    z = jnp.dot(h, w2_ref[...], preferred_element_type=f32) + b_ref[1:2, 0:64]
    h = silu(z).astype(bf16)
    z = jnp.dot(h, w3_ref[...], preferred_element_type=f32) + b_ref[2:3, 0:64]
    h = silu(z).astype(bf16)
    y = jnp.dot(h, w4_ref[...], preferred_element_type=f32) + b_ref[3:4, 0:8]

    # ---- L2-normalize rotation columns; single lane-dense (tile, 8) store ----
    # column layout: [0:3] scaled translation, [3:7] scaled rotation, [7] zero pad
    col = jax.lax.broadcasted_iota(jnp.int32, y.shape, 1)
    is_rot = col >= 3                      # pad column (7) is exactly zero
    rot = jnp.where(is_rot, y, 0.0)
    sumsq = jnp.sum(rot * rot, axis=-1, keepdims=True)
    # normalize(p=2, eps=1e-12): r / max(||r||, eps) == r * rsqrt(max(||r||^2, eps^2))
    inv = jax.lax.rsqrt(jnp.maximum(sumsq, 1e-24))
    y = y * jnp.where(is_rot, inv, 1.0)

    out_ref[...] = y.astype(out_ref.dtype)


# --------------------------------------------------------------------------
# Wrapper
# --------------------------------------------------------------------------
def per_gaussian_fine_tuning_forward(params,
                                     per_gaussian_latent,
                                     audio_latent=None,
                                     motion_history=None,
                                     *,
                                     use_audio=True,
                                     use_motion_history=True,
                                     translation_scaling=1e-4,
                                     rotation_scaling=1e-2,
                                     tile_n=1024):
    """Returns (rotation (N,4), translation (N,3)) — same order as the PyTorch module."""
    n = per_gaussian_latent.shape[0]
    w1, b1, w2, b2, w3, b3, w4, b4 = params

    # ---- input feature slabs (no big (N, D_in) concat / pad in HBM) ----
    xs = [per_gaussian_latent.astype(jnp.float32)]
    if use_audio:
        xs.append(audio_latent.astype(jnp.float32))
    if use_motion_history:
        # (W, N, 3) -> (N, W*3): only a small (N, 24) slab is materialized.
        mh = jnp.transpose(motion_history, (1, 0, 2)).reshape(n, -1)
        xs.append(mh.astype(jnp.float32))

    # ---- split W1 rows to match the input slabs; cast weights to bf16 ----
    w1_blocks = []
    off = 0
    for x in xs:
        d = x.shape[1]
        w1_blocks.append(w1[off:off + d].astype(jnp.bfloat16))
        off += d
    w2b = w2.astype(jnp.bfloat16)
    w3b = w3.astype(jnp.bfloat16)

    # Fold the per-column output scaling into W4 / b4 (exact equivalence:
    # (h@W4 + b4) * s == h@(W4*s) + b4*s), pad to 8 lanes with zeros.
    scale = jnp.concatenate([jnp.full((3,), translation_scaling, jnp.float32),
                             jnp.full((4,), rotation_scaling, jnp.float32)])
    w4s = w4 * scale[None, :]
    b4s = jnp.reshape(b4, (1, -1)) * scale[None, :]
    w4b = jnp.pad(w4s, ((0, 0), (0, 1))).astype(jnp.bfloat16)      # (64, 7) -> (64, 8)

    # ---- stack all biases into one (4, 128) f32 slab ----
    def _row(b):
        b = jnp.reshape(b, (1, -1)).astype(jnp.float32)
        return jnp.pad(b, ((0, 0), (0, 128 - b.shape[1])))
    b_all = jnp.concatenate([_row(b1), _row(b2), _row(b3), _row(b4s)], axis=0)

    # ---- tiling: big tiles to amortize per-step overhead, but keep >=2 grid
    #      steps when possible (v7x has 2 TensorCores); tile is a multiple of 8.
    half = max(8, ((n + 1) // 2 + 7) // 8 * 8)
    tile = max(8, min(tile_n, half))
    grid = (pl.cdiv(n, tile),)      # partial last block handled by Pallas

    x_specs = [pl.BlockSpec((tile, x.shape[1]), lambda i: (i, 0)) for x in xs]
    const_specs = [pl.BlockSpec(w.shape, lambda i: (0, 0))
                   for w in (*w1_blocks, w2b, w3b, w4b, b_all)]

    kernel = functools.partial(_mlp_kernel, n_inputs=len(xs))

    y = pl.pallas_call(
        kernel,
        out_shape=jax.ShapeDtypeStruct((n, 8), jnp.float32),
        grid_spec=pltpu.PrefetchScalarGridSpec(
            num_scalar_prefetch=0,
            grid=grid,
            in_specs=x_specs + const_specs,
            out_specs=pl.BlockSpec((tile, 8), lambda i: (i, 0)),
        ),
        compiler_params=pltpu.CompilerParams(
            dimension_semantics=("parallel",)),
    )(*xs, *w1_blocks, w2b, w3b, w4b, b_all)

    return y[:, 3:7], y[:, :3]          # (rotation, translation)


# --------------------------------------------------------------------------
# Deterministic parameter init (PyTorch nn.Linear default: U(-1/sqrt(fan_in), +))
# --------------------------------------------------------------------------
def init_params(key, input_dim):
    dims = [(input_dim, 128), (128, 64), (64, 64), (64, 7)]
    params = []
    for (fan_in, fan_out) in dims:
        key, kw, kb = jax.random.split(key, 3)
        bound = 1.0 / jnp.sqrt(fan_in)
        w = jax.random.uniform(kw, (fan_in, fan_out), jnp.float32, -bound, bound)
        b = jax.random.uniform(kb, (1, fan_out), jnp.float32, -bound, bound)
        params += [w, b]
    return tuple(params)


# --------------------------------------------------------------------------
# Pure-JAX f32 reference for correctness check
# --------------------------------------------------------------------------
def reference_forward(params, pgl, audio, motion, use_audio, use_motion_history,
                      translation_scaling, rotation_scaling):
    x = pgl
    if use_audio:
        x = jnp.concatenate([x, audio], axis=-1)
    if use_motion_history:
        mh = jnp.transpose(motion, (1, 0, 2)).reshape(pgl.shape[0], -1)
        x = jnp.concatenate([x, mh], axis=-1)
    w1, b1, w2, b2, w3, b3, w4, b4 = params
    h = jax.nn.silu(x @ w1 + b1)
    h = jax.nn.silu(h @ w2 + b2)
    h = jax.nn.silu(h @ w3 + b3)
    out = h @ w4 + b4
    trans = out[:, :3] * translation_scaling
    rot = out[:, 3:] * rotation_scaling
    norm = jnp.sqrt(jnp.sum(rot * rot, axis=-1, keepdims=True))
    rot_n = rot / jnp.maximum(norm, 1e-12)
    return rot_n, trans, norm


# --------------------------------------------------------------------------
# Main
# --------------------------------------------------------------------------
if __name__ == "__main__":
    use_audio = True
    use_motion_history = True
    window_size = 8
    audio_latent_dim = 16
    per_gaussian_latent_dim = 32
    translation_scaling = 1e-4
    rotation_scaling = 1e-2

    n_gaussians = 200   # not a tile multiple; exercises the partial last block

    input_dim = per_gaussian_latent_dim
    if use_audio:
        input_dim += audio_latent_dim
    if use_motion_history:
        input_dim += window_size * 3

    key = jax.random.PRNGKey(0)
    key, k1, k2, k3, kp = jax.random.split(key, 5)
    pgl = jax.random.normal(k1, (n_gaussians, per_gaussian_latent_dim), jnp.float32)
    audio = jax.random.normal(k2, (n_gaussians, audio_latent_dim), jnp.float32)
    motion = jax.random.normal(k3, (window_size, n_gaussians, 3), jnp.float32)

    params = init_params(kp, input_dim)

    rot, trans = per_gaussian_fine_tuning_forward(
        params, pgl, audio, motion,
        use_audio=use_audio, use_motion_history=use_motion_history,
        translation_scaling=translation_scaling, rotation_scaling=rotation_scaling)
    rot = jax.block_until_ready(rot)
    trans = jax.block_until_ready(trans)

    rot_ref, trans_ref, rot_norm_ref = reference_forward(
        params, pgl, audio, motion, use_audio, use_motion_history,
        translation_scaling, rotation_scaling)

    assert rot.shape == (n_gaussians, 4) and trans.shape == (n_gaussians, 3)

    # bf16 matmuls (f32 accumulation) -> tolerances relaxed vs the pure-f32 reference.
    assert jnp.allclose(trans, trans_ref, atol=1e-6, rtol=1e-3), \
        float(jnp.max(jnp.abs(trans - trans_ref)))
    # Quaternion direction is ill-conditioned when the pre-normalized rotation vector
    # is ~0, so only compare rows where it is well-conditioned.
    well = rot_norm_ref > 4e-4
    rot_err = jnp.max(jnp.where(well, jnp.abs(rot - rot_ref), 0.0))
    assert float(rot_err) < 5e-2, float(rot_err)

    print("KERNEL_OK")
</pallas_src>

<mosaic_0001>
module attributes {stable_mosaic.version = 11 : i64} {
  func.func @_mlp_kernel(%arg0: i32, %arg1: memref<104x32xf32, #tpu.memory_space<vmem>>, %arg2: memref<104x16xf32, #tpu.memory_space<vmem>>, %arg3: memref<104x24xf32, #tpu.memory_space<vmem>>, %arg4: memref<32x128xbf16, #tpu.memory_space<vmem>>, %arg5: memref<16x128xbf16, #tpu.memory_space<vmem>>, %arg6: memref<24x128xbf16, #tpu.memory_space<vmem>>, %arg7: memref<128x64xbf16, #tpu.memory_space<vmem>>, %arg8: memref<64x64xbf16, #tpu.memory_space<vmem>>, %arg9: memref<64x8xbf16, #tpu.memory_space<vmem>>, %arg10: memref<4x128xf32, #tpu.memory_space<vmem>>, %arg11: memref<104x8xf32, #tpu.memory_space<vmem>>) attributes {dimension_semantics = [#tpu.dimension_semantics<parallel>], iteration_bounds = array<i64: 2>, scalar_prefetch = 0 : i64, scratch_operands = 0 : i64, tpu.core_type = #tpu.core_type<tc>, window_params = [{transform_indices = @transform_0, window_bounds = array<i64: 104, 32>}, {transform_indices = @transform_1, window_bounds = array<i64: 104, 16>}, {transform_indices = @transform_2, window_bounds = array<i64: 104, 24>}, {pipeline_mode = #tpu.pipeline_mode<synchronous>, transform_indices = @transform_3, window_bounds = array<i64: 32, 128>}, {pipeline_mode = #tpu.pipeline_mode<synchronous>, transform_indices = @transform_4, window_bounds = array<i64: 16, 128>}, {pipeline_mode = #tpu.pipeline_mode<synchronous>, transform_indices = @transform_5, window_bounds = array<i64: 24, 128>}, {pipeline_mode = #tpu.pipeline_mode<synchronous>, transform_indices = @transform_6, window_bounds = array<i64: 128, 64>}, {pipeline_mode = #tpu.pipeline_mode<synchronous>, transform_indices = @transform_7, window_bounds = array<i64: 64, 64>}, {pipeline_mode = #tpu.pipeline_mode<synchronous>, transform_indices = @transform_8, window_bounds = array<i64: 64, 8>}, {pipeline_mode = #tpu.pipeline_mode<synchronous>, transform_indices = @transform_9, window_bounds = array<i64: 4, 128>}, {transform_indices = @transform_10, window_bounds = array<i64: 104, 8>}]} {
    %c0 = arith.constant 0 : index
    %c0_0 = arith.constant 0 : index
    %0 = vector.load %arg10[%c0, %c0_0] : memref<4x128xf32, #tpu.memory_space<vmem>>, vector<1x128xf32>
    %c0_1 = arith.constant 0 : index
    %c0_2 = arith.constant 0 : index
    %1 = vector.load %arg1[%c0_1, %c0_2] : memref<104x32xf32, #tpu.memory_space<vmem>>, vector<104x32xf32>
    %2 = arith.truncf %1 : vector<104x32xf32> to vector<104x32xbf16>
    %c0_3 = arith.constant 0 : index
    %c0_4 = arith.constant 0 : index
    %3 = vector.load %arg4[%c0_3, %c0_4] : memref<32x128xbf16, #tpu.memory_space<vmem>>, vector<32x128xbf16>
    %cst = arith.constant dense<0.000000e+00> : vector<104x128xf32>
    %4 = tpu.matmul %2, %3, %cst {dimension_numbers = #tpu.dot_dimension_numbers<[1], [0], [0], [1], [0, 0, 1, 1], [], []>} : vector<104x32xbf16>, vector<32x128xbf16>, vector<104x128xf32> -> vector<104x128xf32>
    %5 = vector.broadcast %0 : vector<1x128xf32> to vector<104x128xf32>
    %6 = arith.addf %5, %4 : vector<104x128xf32>
    %c0_5 = arith.constant 0 : index
    %c0_6 = arith.constant 0 : index
    %7 = vector.load %arg2[%c0_5, %c0_6] : memref<104x16xf32, #tpu.memory_space<vmem>>, vector<104x16xf32>
    %8 = arith.truncf %7 : vector<104x16xf32> to vector<104x16xbf16>
    %c0_7 = arith.constant 0 : index
    %c0_8 = arith.constant 0 : index
    %9 = vector.load %arg5[%c0_7, %c0_8] : memref<16x128xbf16, #tpu.memory_space<vmem>>, vector<16x128xbf16>
    %cst_9 = arith.constant dense<0.000000e+00> : vector<104x128xf32>
    %10 = tpu.matmul %8, %9, %cst_9 {dimension_numbers = #tpu.dot_dimension_numbers<[1], [0], [0], [1], [0, 0, 1, 1], [], []>} : vector<104x16xbf16>, vector<16x128xbf16>, vector<104x128xf32> -> vector<104x128xf32>
    %11 = arith.addf %6, %10 : vector<104x128xf32>
    %c0_10 = arith.constant 0 : index
    %c0_11 = arith.constant 0 : index
    %12 = vector.load %arg3[%c0_10, %c0_11] : memref<104x24xf32, #tpu.memory_space<vmem>>, vector<104x24xf32>
    %13 = arith.truncf %12 : vector<104x24xf32> to vector<104x24xbf16>
    %c0_12 = arith.constant 0 : index
    %c0_13 = arith.constant 0 : index
    %14 = vector.load %arg6[%c0_12, %c0_13] : memref<24x128xbf16, #tpu.memory_space<vmem>>, vector<24x128xbf16>
    %cst_14 = arith.constant dense<0.000000e+00> : vector<104x128xf32>
    %15 = tpu.matmul %13, %14, %cst_14 {dimension_numbers = #tpu.dot_dimension_numbers<[1], [0], [0], [1], [0, 0, 1, 1], [], []>} : vector<104x24xbf16>, vector<24x128xbf16>, vector<104x128xf32> -> vector<104x128xf32>
    %16 = arith.addf %11, %15 : vector<104x128xf32>
    %17 = arith.negf %16 : vector<104x128xf32>
    %18 = math.exp %17 : vector<104x128xf32>
    %cst_15 = arith.constant 1.000000e+00 : f32
    %19 = vector.broadcast %cst_15 : f32 to vector<104x128xf32>
    %20 = arith.addf %19, %18 : vector<104x128xf32>
    %21 = arith.divf %19, %20 : vector<104x128xf32>
    %22 = arith.mulf %16, %21 : vector<104x128xf32>
    %23 = arith.truncf %22 : vector<104x128xf32> to vector<104x128xbf16>
    %c0_16 = arith.constant 0 : index
    %c0_17 = arith.constant 0 : index
    %24 = vector.load %arg7[%c0_16, %c0_17] : memref<128x64xbf16, #tpu.memory_space<vmem>>, vector<128x64xbf16>
    %cst_18 = arith.constant dense<0.000000e+00> : vector<104x64xf32>
    %25 = tpu.matmul %23, %24, %cst_18 {dimension_numbers = #tpu.dot_dimension_numbers<[1], [0], [0], [1], [0, 0, 1, 1], [], []>} : vector<104x128xbf16>, vector<128x64xbf16>, vector<104x64xf32> -> vector<104x64xf32>
    %c1 = arith.constant 1 : index
    %c0_19 = arith.constant 0 : index
    %26 = vector.load %arg10[%c1, %c0_19] : memref<4x128xf32, #tpu.memory_space<vmem>>, vector<1x64xf32>
    %27 = vector.broadcast %26 : vector<1x64xf32> to vector<104x64xf32>
    %28 = arith.addf %25, %27 : vector<104x64xf32>
    %29 = arith.negf %28 : vector<104x64xf32>
    %30 = math.exp %29 : vector<104x64xf32>
    %cst_20 = arith.constant 1.000000e+00 : f32
    %31 = vector.broadcast %cst_20 : f32 to vector<104x64xf32>
    %32 = arith.addf %31, %30 : vector<104x64xf32>
    %33 = arith.divf %31, %32 : vector<104x64xf32>
    %34 = arith.mulf %28, %33 : vector<104x64xf32>
    %35 = arith.truncf %34 : vector<104x64xf32> to vector<104x64xbf16>
    %c0_21 = arith.constant 0 : index
    %c0_22 = arith.constant 0 : index
    %36 = vector.load %arg8[%c0_21, %c0_22] : memref<64x64xbf16, #tpu.memory_space<vmem>>, vector<64x64xbf16>
    %cst_23 = arith.constant dense<0.000000e+00> : vector<104x64xf32>
    %37 = tpu.matmul %35, %36, %cst_23 {dimension_numbers = #tpu.dot_dimension_numbers<[1], [0], [0], [1], [0, 0, 1, 1], [], []>} : vector<104x64xbf16>, vector<64x64xbf16>, vector<104x64xf32> -> vector<104x64xf32>
    %c2 = arith.constant 2 : index
    %c0_24 = arith.constant 0 : index
    %38 = vector.load %arg10[%c2, %c0_24] : memref<4x128xf32, #tpu.memory_space<vmem>>, vector<1x64xf32>
    %39 = vector.broadcast %38 : vector<1x64xf32> to vector<104x64xf32>
    %40 = arith.addf %37, %39 : vector<104x64xf32>
    %41 = arith.negf %40 : vector<104x64xf32>
    %42 = math.exp %41 : vector<104x64xf32>
    %cst_25 = arith.constant 1.000000e+00 : f32
    %43 = vector.broadcast %cst_25 : f32 to vector<104x64xf32>
    %44 = arith.addf %43, %42 : vector<104x64xf32>
    %45 = arith.divf %43, %44 : vector<104x64xf32>
    %46 = arith.mulf %40, %45 : vector<104x64xf32>
    %47 = arith.truncf %46 : vector<104x64xf32> to vector<104x64xbf16>
    %c0_26 = arith.constant 0 : index
    %c0_27 = arith.constant 0 : index
    %48 = vector.load %arg9[%c0_26, %c0_27] : memref<64x8xbf16, #tpu.memory_space<vmem>>, vector<64x8xbf16>
    %cst_28 = arith.constant dense<0.000000e+00> : vector<104x8xf32>
    %49 = tpu.matmul %47, %48, %cst_28 {dimension_numbers = #tpu.dot_dimension_numbers<[1], [0], [0], [1], [0, 0, 1, 1], [], []>} : vector<104x64xbf16>, vector<64x8xbf16>, vector<104x8xf32> -> vector<104x8xf32>
    %c3 = arith.constant 3 : index
    %c0_29 = arith.constant 0 : index
    %50 = vector.load %arg10[%c3, %c0_29] : memref<4x128xf32, #tpu.memory_space<vmem>>, vector<1x8xf32>
    %51 = vector.broadcast %50 : vector<1x8xf32> to vector<104x8xf32>
    %52 = arith.addf %49, %51 : vector<104x8xf32>
    %53 = tpu.iota {dimensions = array<i32: 1>} : vector<104x8xi32>
    %c3_i32 = arith.constant 3 : i32
    %54 = vector.broadcast %c3_i32 : i32 to vector<104x8xi32>
    %55 = arith.cmpi sge, %53, %54 : vector<104x8xi32>
    %cst_30 = arith.constant 0.000000e+00 : f32
    %56 = vector.broadcast %cst_30 : f32 to vector<104x8xf32>
    %57 = arith.select %55, %52, %56 : vector<104x8xi1>, vector<104x8xf32>
    %58 = arith.mulf %57, %57 : vector<104x8xf32>
    %cst_31 = arith.constant dense<0.000000e+00> : vector<104xf32>
    %59 = vector.multi_reduction <add>, %58, %cst_31 [1] : vector<104x8xf32> to vector<104xf32>
    %60 = vector.shape_cast %59 : vector<104xf32> to vector<104x1xf32>
    %cst_32 = arith.constant 1.000000e-24 : f32
    %61 = vector.broadcast %cst_32 : f32 to vector<104x1xf32>
    %62 = arith.maximumf %60, %61 : vector<104x1xf32>
    %63 = math.rsqrt %62 : vector<104x1xf32>
    %cst_33 = arith.constant 1.000000e+00 : f32
    %64 = vector.shape_cast %63 : vector<104x1xf32> to vector<104x1xf32>
    %65 = vector.broadcast %64 : vector<104x1xf32> to vector<104x8xf32>
    %66 = vector.broadcast %cst_33 : f32 to vector<104x8xf32>
    %67 = arith.select %55, %65, %66 : vector<104x8xi1>, vector<104x8xf32>
    %68 = arith.mulf %52, %67 : vector<104x8xf32>
    %c0_34 = arith.constant 0 : index
    %c0_35 = arith.constant 0 : index
    %69 = vector.load %arg11[%c0_34, %c0_35] : memref<104x8xf32, #tpu.memory_space<vmem>>, vector<104x8xf32>
    tpu.vector_store %arg11[%c0_34, %c0_35], %68 {strides = array<i32>} : memref<104x8xf32, #tpu.memory_space<vmem>>, vector<104x8xf32>,
    return
  }
  func.func @transform_0(%arg0: i32) -> (i32, i32) {
    %c0_i32 = arith.constant 0 : i32
    %c0_i32_0 = arith.constant 0 : i32
    return %arg0, %c0_i32 : i32, i32
  }
  func.func @transform_1(%arg0: i32) -> (i32, i32) {
    %c0_i32 = arith.constant 0 : i32
    %c0_i32_0 = arith.constant 0 : i32
    return %arg0, %c0_i32 : i32, i32
  }
  func.func @transform_2(%arg0: i32) -> (i32, i32) {
    %c0_i32 = arith.constant 0 : i32
    %c0_i32_0 = arith.constant 0 : i32
    return %arg0, %c0_i32 : i32, i32
  }
  func.func @transform_3(%arg0: i32) -> (i32, i32) {
    %c0_i32 = arith.constant 0 : i32
    %c0_i32_0 = arith.constant 0 : i32
    %c0_i32_1 = arith.constant 0 : i32
    return %c0_i32, %c0_i32_0 : i32, i32
  }
  func.func @transform_4(%arg0: i32) -> (i32, i32) {
    %c0_i32 = arith.constant 0 : i32
    %c0_i32_0 = arith.constant 0 : i32
    %c0_i32_1 = arith.constant 0 : i32
    return %c0_i32, %c0_i32_0 : i32, i32
  }
  func.func @transform_5(%arg0: i32) -> (i32, i32) {
    %c0_i32 = arith.constant 0 : i32
    %c0_i32_0 = arith.constant 0 : i32
    %c0_i32_1 = arith.constant 0 : i32
    return %c0_i32, %c0_i32_0 : i32, i32
  }
  func.func @transform_6(%arg0: i32) -> (i32, i32) {
    %c0_i32 = arith.constant 0 : i32
    %c0_i32_0 = arith.constant 0 : i32
    %c0_i32_1 = arith.constant 0 : i32
    return %c0_i32, %c0_i32_0 : i32, i32
  }
  func.func @transform_7(%arg0: i32) -> (i32, i32) {
    %c0_i32 = arith.constant 0 : i32
    %c0_i32_0 = arith.constant 0 : i32
    %c0_i32_1 = arith.constant 0 : i32
    return %c0_i32, %c0_i32_0 : i32, i32
  }
  func.func @transform_8(%arg0: i32) -> (i32, i32) {
    %c0_i32 = arith.constant 0 : i32
    %c0_i32_0 = arith.constant 0 : i32
    %c0_i32_1 = arith.constant 0 : i32
    return %c0_i32, %c0_i32_0 : i32, i32
  }
  func.func @transform_9(%arg0: i32) -> (i32, i32) {
    %c0_i32 = arith.constant 0 : i32
    %c0_i32_0 = arith.constant 0 : i32
    %c0_i32_1 = arith.constant 0 : i32
    return %c0_i32, %c0_i32_0 : i32, i32
  }
  func.func @transform_10(%arg0: i32) -> (i32, i32) {
    %c0_i32 = arith.constant 0 : i32
    %c0_i32_0 = arith.constant 0 : i32
    return %arg0, %c0_i32 : i32, i32
  }
}

</mosaic_0001>

<llo_original>
// kernel: tpu_custom_call.1
$region0: #{tpu_custom_call.1}
  #allocation0 [shape = 'u32[]', space=smem, size = 0x4, offset = 0x4, fixed_abs, tag = 'smem constant byte address 0x4 - core index']
  #allocation1 [shape = 'u32[144,128]{1,0:T(1,128)}', space=vmem, size = 0x12000, scoped, tag = 'internal scratch']
  %s0 = inlined_call_operand.vmem [shape: f32[200,32], index: 0, kind: input, shape index: {}]
  %s1 = inlined_call_operand.vmem [shape: f32[200,16], index: 1, kind: input, shape index: {}]
  %s2 = inlined_call_operand.vmem [shape: f32[200,24], index: 2, kind: input, shape index: {}]
  %s3 = inlined_call_operand.vmem [shape: bf16[32,128], index: 3, kind: input, shape index: {}]
  %s4 = inlined_call_operand.vmem [shape: bf16[16,128], index: 4, kind: input, shape index: {}]
  %s5 = inlined_call_operand.vmem [shape: bf16[24,128], index: 5, kind: input, shape index: {}]
  %s6 = inlined_call_operand.vmem [shape: bf16[128,64], index: 6, kind: input, shape index: {}]
  %s7 = inlined_call_operand.vmem [shape: bf16[64,64], index: 7, kind: input, shape index: {}]
  %s8 = inlined_call_operand.vmem [shape: bf16[64,8], index: 8, kind: input, shape index: {}]
  %s9 = inlined_call_operand.vmem [shape: f32[4,128], index: 9, kind: input, shape index: {}]
  %s10 = inlined_call_operand.vmem [shape: f32[200,8], index: 10, kind: output, shape index: {}]
  %s11 = sld [smem:[#allocation0]]
  $region121: #{tpu_custom_call.1} parent=0
    _
  %s13 = ssub.s32 1, %s11
  %s14 = scalar_select 0, %s13, %s11
  $region1: #{tpu_custom_call.1} parent=0
    #allocation2 [shape = 'u8[106496]{0}', space=vmem, size = 0x1a000, scoped, tag = 'output window, operand 0']
    loop: start=0, step=1, limit=4
    $region2: #{tpu_custom_call.1} parent=1 // loop_pre_header
      _
    $region3: #{tpu_custom_call.1} parent=1 // loop_header
      %s16 = sphi 0, %s20
      %p17 = scmp.ge.s32.totalorder %s16, 4
      %s26 = sphi 0, %s28
      %s29 = sphi 0, %s26
      %s30 = sphi 0, %s29
      %s46 = sphi 0, %s30
      %s52 = sphi 0, %s54
      %s55 = sphi 0, %s52
      %s56 = sphi 0, %s55
      %s72 = sphi 0, %s56
      %s78 = sphi 0, %s80
      %s81 = sphi 0, %s78
      %s82 = sphi 0, %s81
      %s98 = sphi 0, %s82
      %s102 = sphi 0, %s102
      %s104 = sphi 0, %s102
      %s105 = sphi 0, %s104
      %s119 = sphi 0, %s105
      %s123 = sphi 0, %s123
      %s125 = sphi 0, %s123
      %s126 = sphi 0, %s125
      %s140 = sphi 0, %s126
      %s144 = sphi 0, %s144
      %s146 = sphi 0, %s144
      %s147 = sphi 0, %s146
      %s161 = sphi 0, %s147
      %s165 = sphi 0, %s165
      %s167 = sphi 0, %s165
      %s168 = sphi 0, %s167
      %s182 = sphi 0, %s168
      %s186 = sphi 0, %s186
      %s188 = sphi 0, %s186
      %s189 = sphi 0, %s188
      %s203 = sphi 0, %s189
      %s207 = sphi 0, %s207
      %s209 = sphi 0, %s207
      %s210 = sphi 0, %s209
      %s224 = sphi 0, %s210
      %s228 = sphi 0, %s228
      %s230 = sphi 0, %s228
      %s231 = sphi 0, %s230
      %s245 = sphi 0, %s231
      %s251 = sphi 0, %s253
      %s254 = sphi 0, %s251
      %s255 = sphi 0, %s254
      %s271 = sphi 0, %s255
    $region4: #{tpu_custom_call.1} parent=1 // loop_header_branch
      %19 = sbr.rel (%p17) target = $region8
    $region5: #{tpu_custom_call.1} parent=1 // loop_body
      %s21 = ssub.s32 %s16, 1
      %s22 = ssub.s32 %s16, 2
      %s23 = sadd.s32 %s16, 1
      %s24 = ssub.s32 %s16, %s23
      %p25 = scmp.eq.s32.totalorder %s24, 0
      %s27 = sadd.s32 %s26, 1
      %s28 = scalar_select %p25, %s26, %s27
      %p31 = pneg %p25
      %p32 = scmp.eq.s32.totalorder %s16, 1
      %p33 = por %p31, %p32
      %p34 = scmp.ne.s32.totalorder %s26, %s29
      %p35 = scmp.eq.s32.totalorder %s16, 0
      %p36 = por %p34, %p35
      %p37 = scmp.ne.s32.totalorder %s26, %s29
      %p38 = scmp.eq.s32.totalorder %s21, 1
      %p39 = por %p37, %p38
      %p40 = scmp.ne.s32.totalorder %s29, %s30
      %p41 = scmp.eq.s32.totalorder %s21, 0
      %p42 = por %p40, %p41
      %p43 = scmp.ne.s32.totalorder %s29, %s30
      %p44 = scmp.eq.s32.totalorder %s22, 1
      %p45 = por %p43, %p44
      %p47 = scmp.ne.s32.totalorder %s30, %s46
      %p48 = scmp.eq.s32.totalorder %s22, 0
      %p49 = por %p47, %p48
      %s50 = ssub.s32 %s16, %s23
      %p51 = scmp.eq.s32.totalorder %s50, 0
      %s53 = sadd.s32 %s52, 1
      %s54 = scalar_select %p51, %s52, %s53
      %p57 = pneg %p51
      %p58 = scmp.eq.s32.totalorder %s16, 1
      %p59 = por %p57, %p58
      %p60 = scmp.ne.s32.totalorder %s52, %s55
      %p61 = scmp.eq.s32.totalorder %s16, 0
      %p62 = por %p60, %p61
      %p63 = scmp.ne.s32.totalorder %s52, %s55
      %p64 = scmp.eq.s32.totalorder %s21, 1
      %p65 = por %p63, %p64
      %p66 = scmp.ne.s32.totalorder %s55, %s56
      %p67 = scmp.eq.s32.totalorder %s21, 0
      %p68 = por %p66, %p67
      %p69 = scmp.ne.s32.totalorder %s55, %s56
      %p70 = scmp.eq.s32.totalorder %s22, 1
      %p71 = por %p69, %p70
      %p73 = scmp.ne.s32.totalorder %s56, %s72
      %p74 = scmp.eq.s32.totalorder %s22, 0
      %p75 = por %p73, %p74
      %s76 = ssub.s32 %s16, %s23
      %p77 = scmp.eq.s32.totalorder %s76, 0
      %s79 = sadd.s32 %s78, 1
      %s80 = scalar_select %p77, %s78, %s79
      %p83 = pneg %p77
      %p84 = scmp.eq.s32.totalorder %s16, 1
      %p85 = por %p83, %p84
      %p86 = scmp.ne.s32.totalorder %s78, %s81
      %p87 = scmp.eq.s32.totalorder %s16, 0
      %p88 = por %p86, %p87
      %p89 = scmp.ne.s32.totalorder %s78, %s81
      %p90 = scmp.eq.s32.totalorder %s21, 1
      %p91 = por %p89, %p90
      %p92 = scmp.ne.s32.totalorder %s81, %s82
      %p93 = scmp.eq.s32.totalorder %s21, 0
      %p94 = por %p92, %p93
      %p95 = scmp.ne.s32.totalorder %s81, %s82
      %p96 = scmp.eq.s32.totalorder %s22, 1
      %p97 = por %p95, %p96
      %p99 = scmp.ne.s32.totalorder %s82, %s98
      %p100 = scmp.eq.s32.totalorder %s22, 0
      %p101 = por %p99, %p100
      %s103 = sadd.s32 %s102, 1
      %p106 = scmp.eq.s32.totalorder %s16, 1
      %p107 = scmp.ne.s32.totalorder %s102, %s104
      %p108 = scmp.eq.s32.totalorder %s16, 0
      %p109 = por %p107, %p108
      %p110 = scmp.ne.s32.totalorder %s102, %s104
      %p111 = scmp.eq.s32.totalorder %s21, 1
      %p112 = por %p110, %p111
      %p113 = scmp.ne.s32.totalorder %s104, %s105
      %p114 = scmp.eq.s32.totalorder %s21, 0
      %p115 = por %p113, %p114
      %p116 = scmp.ne.s32.totalorder %s104, %s105
      %p117 = scmp.eq.s32.totalorder %s22, 1
      %p118 = por %p116, %p117
      %p120 = scmp.ne.s32.totalorder %s105, %s119
      %p121 = scmp.eq.s32.totalorder %s22, 0
      %p122 = por %p120, %p121
      %s124 = sadd.s32 %s123, 1
      %p127 = scmp.eq.s32.totalorder %s16, 1
      %p128 = scmp.ne.s32.totalorder %s123, %s125
      %p129 = scmp.eq.s32.totalorder %s16, 0
      %p130 = por %p128, %p129
      %p131 = scmp.ne.s32.totalorder %s123, %s125
      %p132 = scmp.eq.s32.totalorder %s21, 1
      %p133 = por %p131, %p132
      %p134 = scmp.ne.s32.totalorder %s125, %s126
      %p135 = scmp.eq.s32.totalorder %s21, 0
      %p136 = por %p134, %p135
      %p137 = scmp.ne.s32.totalorder %s125, %s126
      %p138 = scmp.eq.s32.totalorder %s22, 1
      %p139 = por %p137, %p138
      %p141 = scmp.ne.s32.totalorder %s126, %s140
      %p142 = scmp.eq.s32.totalorder %s22, 0
      %p143 = por %p141, %p142
      %s145 = sadd.s32 %s144, 1
      %p148 = scmp.eq.s32.totalorder %s16, 1
      %p149 = scmp.ne.s32.totalorder %s144, %s146
      %p150 = scmp.eq.s32.totalorder %s16, 0
      %p151 = por %p149, %p150
      %p152 = scmp.ne.s32.totalorder %s144, %s146
      %p153 = scmp.eq.s32.totalorder %s21, 1
      %p154 = por %p152, %p153
      %p155 = scmp.ne.s32.totalorder %s146, %s147
      %p156 = scmp.eq.s32.totalorder %s21, 0
      %p157 = por %p155, %p156
      %p158 = scmp.ne.s32.totalorder %s146, %s147
      %p159 = scmp.eq.s32.totalorder %s22, 1
      %p160 = por %p158, %p159
      %p162 = scmp.ne.s32.totalorder %s147, %s161
      %p163 = scmp.eq.s32.totalorder %s22, 0
      %p164 = por %p162, %p163
      %s166 = sadd.s32 %s165, 1
      %p169 = scmp.eq.s32.totalorder %s16, 1
      %p170 = scmp.ne.s32.totalorder %s165, %s167
      %p171 = scmp.eq.s32.totalorder %s16, 0
      %p172 = por %p170, %p171
      %p173 = scmp.ne.s32.totalorder %s165, %s167
      %p174 = scmp.eq.s32.totalorder %s21, 1
      %p175 = por %p173, %p174
      %p176 = scmp.ne.s32.totalorder %s167, %s168
      %p177 = scmp.eq.s32.totalorder %s21, 0
      %p178 = por %p176, %p177
      %p179 = scmp.ne.s32.totalorder %s167, %s168
      %p180 = scmp.eq.s32.totalorder %s22, 1
      %p181 = por %p179, %p180
      %p183 = scmp.ne.s32.totalorder %s168, %s182
      %p184 = scmp.eq.s32.totalorder %s22, 0
      %p185 = por %p183, %p184
      %s187 = sadd.s32 %s186, 1
      %p190 = scmp.eq.s32.totalorder %s16, 1
      %p191 = scmp.ne.s32.totalorder %s186, %s188
      %p192 = scmp.eq.s32.totalorder %s16, 0
      %p193 = por %p191, %p192
      %p194 = scmp.ne.s32.totalorder %s186, %s188
      %p195 = scmp.eq.s32.totalorder %s21, 1
      %p196 = por %p194, %p195
      %p197 = scmp.ne.s32.totalorder %s188, %s189
      %p198 = scmp.eq.s32.totalorder %s21, 0
      %p199 = por %p197, %p198
      %p200 = scmp.ne.s32.totalorder %s188, %s189
      %p201 = scmp.eq.s32.totalorder %s22, 1
      %p202 = por %p200, %p201
      %p204 = scmp.ne.s32.totalorder %s189, %s203
      %p205 = scmp.eq.s32.totalorder %s22, 0
      %p206 = por %p204, %p205
      %s208 = sadd.s32 %s207, 1
      %p211 = scmp.eq.s32.totalorder %s16, 1
      %p212 = scmp.ne.s32.totalorder %s207, %s209
      %p213 = scmp.eq.s32.totalorder %s16, 0
      %p214 = por %p212, %p213
      %p215 = scmp.ne.s32.totalorder %s207, %s209
      %p216 = scmp.eq.s32.totalorder %s21, 1
      %p217 = por %p215, %p216
      %p218 = scmp.ne.s32.totalorder %s209, %s210
      %p219 = scmp.eq.s32.totalorder %s21, 0
      %p220 = por %p218, %p219
      %p221 = scmp.ne.s32.totalorder %s209, %s210
      %p222 = scmp.eq.s32.totalorder %s22, 1
      %p223 = por %p221, %p222
      %p225 = scmp.ne.s32.totalorder %s210, %s224
      %p226 = scmp.eq.s32.totalorder %s22, 0
      %p227 = por %p225, %p226
      %s229 = sadd.s32 %s228, 1
      %p232 = scmp.eq.s32.totalorder %s16, 1
      %p233 = scmp.ne.s32.totalorder %s228, %s230
      %p234 = scmp.eq.s32.totalorder %s16, 0
      %p235 = por %p233, %p234
      %p236 = scmp.ne.s32.totalorder %s228, %s230
      %p237 = scmp.eq.s32.totalorder %s21, 1
      %p238 = por %p236, %p237
      %p239 = scmp.ne.s32.totalorder %s230, %s231
      %p240 = scmp.eq.s32.totalorder %s21, 0
      %p241 = por %p239, %p240
      %p242 = scmp.ne.s32.totalorder %s230, %s231
      %p243 = scmp.eq.s32.totalorder %s22, 1
      %p244 = por %p242, %p243
      %p246 = scmp.ne.s32.totalorder %s231, %s245
      %p247 = scmp.eq.s32.totalorder %s22, 0
      %p248 = por %p246, %p247
      %s249 = ssub.s32 %s16, %s23
      %p250 = scmp.eq.s32.totalorder %s249, 0
      %s252 = sadd.s32 %s251, 1
      %s253 = scalar_select %p250, %s251, %s252
      %p256 = pneg %p250
      %p257 = scmp.eq.s32.totalorder %s16, 1
      %p258 = por %p256, %p257
      %p259 = scmp.ne.s32.totalorder %s251, %s254
      %p260 = scmp.eq.s32.totalorder %s16, 0
      %p261 = por %p259, %p260
      %p262 = scmp.ne.s32.totalorder %s251, %s254
      %p263 = scmp.eq.s32.totalorder %s21, 1
      %p264 = por %p262, %p263
      %p265 = scmp.ne.s32.totalorder %s254, %s255
      %p266 = scmp.eq.s32.totalorder %s21, 0
      %p267 = por %p265, %p266
      %p268 = scmp.ne.s32.totalorder %s254, %s255
      %p269 = scmp.eq.s32.totalorder %s22, 1
      %p270 = por %p268, %p269
      %p272 = scmp.ne.s32.totalorder %s255, %s271
      %p273 = scmp.eq.s32.totalorder %s22, 0
      %p274 = por %p272, %p273
      %p275 = scmp.le.s32.totalorder 1, %s16
      %p276 = scmp.lt.s32.totalorder %s16, 3
      %p277 = pnand %p275, %p276
      %p278 = pneg %p277
      // Predicated region
      $region9: #{tpu_custom_call.1} parent=5 // pred_check
        _
      $region10: #{tpu_custom_call.1} parent=5 // pred_check_branch
        %280 = sbr.rel (%p277) target = $region12
      $region11: #{tpu_custom_call.1} parent=5 // pred_region
        %s281 = ssub.s32 %s16, 1
        // Predicated region
        $region13: #{tpu_custom_call.1} parent=11 // pred_check
          %p282 = pneg %p115
        $region14: #{tpu_custom_call.1} parent=11 // pred_check_branch
          %284 = sbr.rel (%p282) target = $region16
        $region15: #{tpu_custom_call.1} parent=11 // pred_region
          _
        $region16: #{tpu_custom_call.1} parent=11 // pred_fallthru
          _
        // Predicated region
        $region17: #{tpu_custom_call.1} parent=11 // pred_check
          %p285 = pneg %p136
        $region18: #{tpu_custom_call.1} parent=11 // pred_check_branch
          %287 = sbr.rel (%p285) target = $region20
        $region19: #{tpu_custom_call.1} parent=11 // pred_region
          _
        $region20: #{tpu_custom_call.1} parent=11 // pred_fallthru
          _
        // Predicated region
        $region21: #{tpu_custom_call.1} parent=11 // pred_check
          %p288 = pneg %p157
        $region22: #{tpu_custom_call.1} parent=11 // pred_check_branch
          %290 = sbr.rel (%p288) target = $region24
        $region23: #{tpu_custom_call.1} parent=11 // pred_region
          _
        $region24: #{tpu_custom_call.1} parent=11 // pred_fallthru
          _
        // Predicated region
        $region25: #{tpu_custom_call.1} parent=11 // pred_check
          %p291 = pneg %p178
        $region26: #{tpu_custom_call.1} parent=11 // pred_check_branch
          %293 = sbr.rel (%p291) target = $region28
        $region27: #{tpu_custom_call.1} parent=11 // pred_region
          _
        $region28: #{tpu_custom_call.1} parent=11 // pred_fallthru
          _
        // Predicated region
        $region29: #{tpu_custom_call.1} parent=11 // pred_check
          %p294 = pneg %p199
        $region30: #{tpu_custom_call.1} parent=11 // pred_check_branch
          %296 = sbr.rel (%p294) target = $region32
        $region31: #{tpu_custom_call.1} parent=11 // pred_region
          _
        $region32: #{tpu_custom_call.1} parent=11 // pred_fallthru
          _
        // Predicated region
        $region33: #{tpu_custom_call.1} parent=11 // pred_check
          %p297 = pneg %p220
        $region34: #{tpu_custom_call.1} parent=11 // pred_check_branch
          %299 = sbr.rel (%p297) target = $region36
        $region35: #{tpu_custom_call.1} parent=11 // pred_region
          _
        $region36: #{tpu_custom_call.1} parent=11 // pred_fallthru
          _
        // Predicated region
        $region37: #{tpu_custom_call.1} parent=11 // pred_check
          %p300 = pneg %p241
        $region38: #{tpu_custom_call.1} parent=11 // pred_check_branch
          %302 = sbr.rel (%p300) target = $region40
        $region39: #{tpu_custom_call.1} parent=11 // pred_region
          _
        $region40: #{tpu_custom_call.1} parent=11 // pred_fallthru
          _
      $region12: #{tpu_custom_call.1} parent=5 // pred_fallthru
        _
      %p303 = scmp.lt.s32.totalorder %s16, 2
      // Predicated region
      $region41: #{tpu_custom_call.1} parent=5 // pred_check
        %p304 = pneg %p303
      $region42: #{tpu_custom_call.1} parent=5 // pred_check_branch
        %306 = sbr.rel (%p304) target = $region44
      $region43: #{tpu_custom_call.1} parent=5 // pred_region
        // Predicated region
        $region45: #{tpu_custom_call.1} parent=43 // pred_check
          %p307 = pneg %p36
        $region46: #{tpu_custom_call.1} parent=43 // pred_check_branch
          %309 = sbr.rel (%p307) target = $region48
        $region47: #{tpu_custom_call.1} parent=43 // pred_region
          %s310 = smul.u32 13, %s16
          %s311 = ssub.s32 25, %s310
          %p312 = scmp.lt.s32.totalorder %s311, 13
          %s313 = scalar_select %p312, %s311, 13
          %s314 = smul.u32 128, %s313
          %p315 = scmp.lt.s32.totalorder %s310, 24
          %s316 = scalar_select %p315, %s310, 24
          %s317 = smul.addr %s316, 8
          %s318 = scalar_lea.vmem %s0, %s317
          %s319 = smul.u32 13, %s16
          %s320 = ssub.s32 25, %s319
          %p321 = scmp.lt.s32.totalorder %s320, 13
          %s322 = scalar_select %p321, %s320, 13
          %s323 = smul.u32 128, %s322
        $region48: #{tpu_custom_call.1} parent=43 // pred_fallthru
          _
        // Predicated region
        $region49: #{tpu_custom_call.1} parent=43 // pred_check
          %p324 = pneg %p62
        $region50: #{tpu_custom_call.1} parent=43 // pred_check_branch
          %326 = sbr.rel (%p324) target = $region52
        $region51: #{tpu_custom_call.1} parent=43 // pred_region
          %s327 = smul.u32 13, %s16
          %s328 = ssub.s32 25, %s327
          %p329 = scmp.lt.s32.totalorder %s328, 13
          %s330 = scalar_select %p329, %s328, 13
          %s331 = smul.u32 128, %s330
          %p332 = scmp.lt.s32.totalorder %s327, 24
          %s333 = scalar_select %p332, %s327, 24
          %s334 = smul.addr %s333, 8
          %s335 = scalar_lea.vmem %s1, %s334
          %s336 = smul.u32 13, %s16
          %s337 = ssub.s32 25, %s336
          %p338 = scmp.lt.s32.totalorder %s337, 13
          %s339 = scalar_select %p338, %s337, 13
          %s340 = smul.u32 128, %s339
        $region52: #{tpu_custom_call.1} parent=43 // pred_fallthru
          _
        // Predicated region
        $region53: #{tpu_custom_call.1} parent=43 // pred_check
          %p341 = pneg %p88
        $region54: #{tpu_custom_call.1} parent=43 // pred_check_branch
          %343 = sbr.rel (%p341) target = $region56
        $region55: #{tpu_custom_call.1} parent=43 // pred_region
          %s344 = smul.u32 13, %s16
          %s345 = ssub.s32 25, %s344
          %p346 = scmp.lt.s32.totalorder %s345, 13
          %s347 = scalar_select %p346, %s345, 13
          %s348 = smul.u32 128, %s347
          %p349 = scmp.lt.s32.totalorder %s344, 24
          %s350 = scalar_select %p349, %s344, 24
          %s351 = smul.addr %s350, 8
          %s352 = scalar_lea.vmem %s2, %s351
          %s353 = smul.u32 13, %s16
          %s354 = ssub.s32 25, %s353
          %p355 = scmp.lt.s32.totalorder %s354, 13
          %s356 = scalar_select %p355, %s354, 13
          %s357 = smul.u32 128, %s356
        $region56: #{tpu_custom_call.1} parent=43 // pred_fallthru
          _
      $region44: #{tpu_custom_call.1} parent=5 // pred_fallthru
        _
      %p358 = scmp.le.s32.totalorder 1, %s16
      %p359 = scmp.lt.s32.totalorder %s16, 3
      %p360 = pnand %p358, %p359
      %p361 = pneg %p360
      // Predicated region
      $region57: #{tpu_custom_call.1} parent=5 // pred_check
        _
      $region58: #{tpu_custom_call.1} parent=5 // pred_check_branch
        %363 = sbr.rel (%p360) target = $region60
      $region59: #{tpu_custom_call.1} parent=5 // pred_region
        %s364 = ssub.s32 %s16, 1
        %s365 = smul.u32 13, %s21
        %s366 = ssub.s32 25, %s365
        %p367 = scmp.lt.s32.totalorder %s366, 13
        %s368 = scalar_select %p367, %s366, 13
        %s369 = smul.u32 128, %s368
        %p370 = scmp.lt.s32.totalorder %s365, 24
        %s371 = scalar_select %p370, %s365, 24
        %s372 = smul.addr %s371, 8
        %s373 = scalar_lea.vmem %s0, %s372
        %p374 = pneg %p42
        %p375 = pneg %p39
        %s376 = smul.u32 13, %s21
        %s377 = ssub.s32 25, %s376
        %p378 = scmp.lt.s32.totalorder %s377, 13
        %s379 = scalar_select %p378, %s377, 13
        %s380 = smul.u32 128, %s379
        %p381 = scmp.lt.s32.totalorder %s376, 24
        %s382 = scalar_select %p381, %s376, 24
        %s383 = smul.addr %s382, 8
        %s384 = scalar_lea.vmem %s1, %s383
        %p385 = pneg %p68
        %p386 = pneg %p65
        %s387 = smul.u32 13, %s21
        %s388 = ssub.s32 25, %s387
        %p389 = scmp.lt.s32.totalorder %s388, 13
        %s390 = scalar_select %p389, %s388, 13
        %s391 = smul.u32 128, %s390
        %p392 = scmp.lt.s32.totalorder %s387, 24
        %s393 = scalar_select %p392, %s387, 24
        %s394 = smul.addr %s393, 8
        %s395 = scalar_lea.vmem %s2, %s394
        %p396 = pneg %p94
        %p397 = pneg %p91
        %p398 = pneg %p115
        %p399 = pneg %p112
        %p400 = pneg %p136
        %p401 = pneg %p133
        %p402 = pneg %p157
        %p403 = pneg %p154
        %p404 = pneg %p178
        %p405 = pneg %p175
        %p406 = pneg %p199
        %p407 = pneg %p196
        %p408 = pneg %p220
        %p409 = pneg %p217
        %p410 = pneg %p241
        %p411 = pneg %p238
        %p412 = pneg %p267
        %p413 = pneg %p264
        %s414 = sand.u32 %s254, 1
        %s415 = sand.u32 %s254, 1
        %s416 = smul.addr %s415, 104
        %s417 = scalar_lea.vmem [#allocation2], %s416
        %s418 = smul.u32 13, %s21
        %s419 = ssub.s32 25, %s418
        %p420 = scmp.lt.s32.totalorder %s419, 13
        %s421 = scalar_select %p420, %s419, 13
        %s422 = smul.u32 128, %s421
        %p423 = scmp.lt.s32.totalorder %s418, 24
        %s424 = scalar_select %p423, %s418, 24
        %s425 = smul.addr %s424, 8
        %s426 = scalar_lea.vmem %s0, %s425
        %s427 = smul.u32 13, %s21
        %s428 = ssub.s32 25, %s427
        %p429 = scmp.lt.s32.totalorder %s428, 13
        %s430 = scalar_select %p429, %s428, 13
        %s431 = smul.u32 128, %s430
        %s432 = smul.u32 13, %s21
        %s433 = ssub.s32 25, %s432
        %p434 = scmp.lt.s32.totalorder %s433, 13
        %s435 = scalar_select %p434, %s433, 13
        %s436 = smul.u32 128, %s435
        %p437 = scmp.lt.s32.totalorder %s432, 24
        %s438 = scalar_select %p437, %s432, 24
        %s439 = smul.addr %s438, 8
        %s440 = scalar_lea.vmem %s1, %s439
        %s441 = smul.u32 13, %s21
        %s442 = ssub.s32 25, %s441
        %p443 = scmp.lt.s32.totalorder %s442, 13
        %s444 = scalar_select %p443, %s442, 13
        %s445 = smul.u32 128, %s444
        %s446 = smul.u32 13, %s21
        %s447 = ssub.s32 25, %s446
        %p448 = scmp.lt.s32.totalorder %s447, 13
        %s449 = scalar_select %p448, %s447, 13
        %s450 = smul.u32 128, %s449
        %p451 = scmp.lt.s32.totalorder %s446, 24
        %s452 = scalar_select %p451, %s446, 24
        %s453 = smul.addr %s452, 8
        %s454 = scalar_lea.vmem %s2, %s453
        %s455 = smul.u32 13, %s21
        %s456 = ssub.s32 25, %s455
        %p457 = scmp.lt.s32.totalorder %s456, 13
        %s458 = scalar_select %p457, %s456, 13
        %s459 = smul.u32 128, %s458
        %s460 = smul.u32 13, %s21
        %s461 = ssub.s32 25, %s460
        %p462 = scmp.lt.s32.totalorder %s461, 13
        %s463 = scalar_select %p462, %s461, 13
        %s464 = smul.u32 128, %s463
        %v466 = vld [vmem:[%s9] sm:$0x1]
        %v467 = vld [vmem:[%s426] sm:$0xff]
        %v468 = vld [vmem:[%s426 + $0x8] sm:$0xff]
        %v469 = vld [vmem:[%s426 + $0x10] sm:$0xff]
        %v470 = vld [vmem:[%s426 + $0x18] sm:$0xff]
        %v471 = vld [vmem:[%s426 + $0x20] sm:$0xff]
        %v472 = vld [vmem:[%s426 + $0x28] sm:$0xff]
        %v473 = vld [vmem:[%s426 + $0x30] sm:$0xff]
        %v474 = vld [vmem:[%s426 + $0x38] sm:$0xff]
        %v475 = vld [vmem:[%s426 + $0x40] sm:$0xff]
        %v476 = vld [vmem:[%s426 + $0x48] sm:$0xff]
        %v477 = vld [vmem:[%s426 + $0x50] sm:$0xff]
        %v478 = vld [vmem:[%s426 + $0x58] sm:$0xff]
        %v479 = vld [vmem:[%s426 + $0x60] sm:$0xff]
        %v480 = vpack.c.bf16 %v468, %v467
        %v481 = vpack.c.bf16 %v470, %v469
        %v482 = vpack.c.bf16 %v472, %v471
        %v483 = vpack.c.bf16 %v474, %v473
        %v484 = vpack.c.bf16 %v476, %v475
        %v485 = vpack.c.bf16 %v478, %v477
        %v486 = vpack.c.bf16 %v479, %v479
        %v487 = vld [vmem:[%s3] sm:$0xf]
        %v488 = vld [vmem:[%s3 + $0x4] sm:$0xf]
        %v489 = vld [vmem:[%s3 + $0x8] sm:$0xf]
        %v490 = vld [vmem:[%s3 + $0xc] sm:$0xf]
        %v495 = vunpack.c.l.b16 %v487
        %v496 = vunpack.c.l.b16 %v488
        %v497 = vunpack.c.l.b16 %v489
        %v498 = vunpack.c.l.b16 %v490
        %v499 = vpack.c.b16 %v496, %v495
        %v500 = vpack.c.b16 %v498, %v497
        %vm503 = vcmask 261120
        %v505 = vsel %vm503, %v480, 0
        %v508 = vsel %vm503, %v481, 0
        %v511 = vsel %vm503, %v482, 0
        %v514 = vsel %vm503, %v483, 0
        %v517 = vsel %vm503, %v484, 0
        %v520 = vsel %vm503, %v485, 0
        %v523 = vsel %vm503, %v486, 0
        %525 = vmatprep.subr.bf16.mxu0 0
        %526 = vmatpush1.bf16.msra.mxu0 %v499
        %527 = vmatprep.subr.bf16.mxu0 0
        %528 = vmatpush1.bf16.msra.mxu0 %v500
        %529 = vmatprep.subr.bf16.mxu0 0
        %530 = vmatpush1.bf16.msra.mxu0 0
        %531 = vmatprep.subr.bf16.mxu0 0
        %532 = vmatpush1.bf16.msra.mxu0 0
        %533 = vmatprep.subr.bf16.mxu0 0
        %534 = vmatpush1.bf16.msra.mxu0 0
        %535 = vmatprep.subr.bf16.mxu0 0
        %536 = vmatpush1.bf16.msra.mxu0 0
        %537 = vmatprep.subr.bf16.mxu0 0
        %538 = vmatpush1.bf16.msra.mxu0 0
        %539 = vmatprep.subr.bf16.mxu0 0
        %540 = vmatpush1.bf16.msra.mxu0 0
        %541 = vmatprep.subr.bf16.mxu0 0
        %542 = vmatpush1.bf16.msra.mxu0 0
        %543 = vmatprep.subr.bf16.mxu0 0
        %544 = vmatpush1.bf16.msra.mxu0 0
        %545 = vmatprep.subr.bf16.mxu0 0
        %546 = vmatpush1.bf16.msra.mxu0 0
        %547 = vmatprep.subr.bf16.mxu0 0
        %548 = vmatpush1.bf16.msra.mxu0 0
        %549 = vmatprep.subr.bf16.mxu0 0
        %550 = vmatpush1.bf16.msra.mxu0 0
        %551 = vmatprep.subr.bf16.mxu0 0
        %552 = vmatpush1.bf16.msra.mxu0 0
        %553 = vmatprep.subr.bf16.mxu0 0
        %554 = vmatpush1.bf16.msra.mxu0 0
        %555 = vmatprep.subr.bf16.mxu0 0
        %556 = vmatpush1.bf16.msra.mxu0 0
        %557 = vmatprep.mubr.bf16.mxu0 0
        %558 = vmatmul.mubr.bf16.gmra.mrb[0].mxu0 %v505
        %v559 = vpop.f32.mrb[0].mxu0
        %v560 = vadd.f32 0.0, %v559
        %v561 = vpop.f32.mrb[0].mxu0
        %v562 = vpop.f32.mrb[0].mxu0
        %v563 = vadd.f32 0.0, %v562
        %v564 = vpop.f32.mrb[0].mxu0
        %565 = vmatprep.mubr.bf16.mxu0 0
        %566 = vmatmul.mubr.bf16.gmra.mrb[0].mxu0 %v508
        %v567 = vpop.f32.mrb[0].mxu0
        %v568 = vadd.f32 0.0, %v567
        %v569 = vpop.f32.mrb[0].mxu0
        %v570 = vpop.f32.mrb[0].mxu0
        %v571 = vadd.f32 0.0, %v570
        %v572 = vpop.f32.mrb[0].mxu0
        %573 = vmatprep.mubr.bf16.mxu0 0
        %574 = vmatmul.mubr.bf16.gmra.mrb[0].mxu0 %v511
        %v575 = vpop.f32.mrb[0].mxu0
        %v576 = vadd.f32 0.0, %v575
        %v577 = vpop.f32.mrb[0].mxu0
        %v578 = vpop.f32.mrb[0].mxu0
        %v579 = vadd.f32 0.0, %v578
        %v580 = vpop.f32.mrb[0].mxu0
        %581 = vmatprep.mubr.bf16.mxu0 0
        %582 = vmatmul.mubr.bf16.gmra.mrb[0].mxu0 %v514
        %v583 = vpop.f32.mrb[0].mxu0
        %v584 = vadd.f32 0.0, %v583
        %v585 = vpop.f32.mrb[0].mxu0
        %v586 = vpop.f32.mrb[0].mxu0
        %v587 = vadd.f32 0.0, %v586
        %v588 = vpop.f32.mrb[0].mxu0
        %589 = vmatprep.mubr.bf16.mxu0 0
        %590 = vmatmul.mubr.bf16.gmra.mrb[0].mxu0 %v517
        %v591 = vpop.f32.mrb[0].mxu0
        %v592 = vadd.f32 0.0, %v591
        %v593 = vpop.f32.mrb[0].mxu0
        %v594 = vpop.f32.mrb[0].mxu0
        %v595 = vadd.f32 0.0, %v594
        %v596 = vpop.f32.mrb[0].mxu0
        %597 = vmatprep.mubr.bf16.mxu0 0
        %598 = vmatmul.mubr.bf16.gmra.mrb[0].mxu0 %v520
        %v599 = vpop.f32.mrb[0].mxu0
        %v600 = vadd.f32 0.0, %v599
        %v601 = vpop.f32.mrb[0].mxu0
        %v602 = vpop.f32.mrb[0].mxu0
        %v603 = vadd.f32 0.0, %v602
        %v604 = vpop.f32.mrb[0].mxu0
        %605 = vmatprep.mubr.bf16.mxu0 0
        %606 = vmatmul.mubr.bf16.gmra.mrb[0].mxu0 %v523
        %v607 = vpop.f32.mrb[0].mxu0
        %v608 = vadd.f32 0.0, %v607
        %v609 = vpop.f32.mrb[0].mxu0
        %v610 = vpop.f32.mrb[0].mxu0
        %v611 = vpop.f32.mrb[0].mxu0
        %612 = vdwg.mxu0
        %v613 = vlaneseq
        %v614 = vshrl.u32 %v613, 7
        %v615 = vsub.s32 0, %v614
        %v616 = vrot.slane %v466, %v615
        %v617 = vadd.f32 %v616, %v560
        %v618 = vadd.f32 %v616, %v563
        %v619 = vadd.f32 %v616, %v568
        %v620 = vadd.f32 %v616, %v571
        %v621 = vadd.f32 %v616, %v576
        %v622 = vadd.f32 %v616, %v579
        %v623 = vadd.f32 %v616, %v584
        %v624 = vadd.f32 %v616, %v587
        %v625 = vadd.f32 %v616, %v592
        %v626 = vadd.f32 %v616, %v595
        %v627 = vadd.f32 %v616, %v600
        %v628 = vadd.f32 %v616, %v603
        %v629 = vadd.f32 %v616, %v608
        %v630 = vld [vmem:[%s440] sm:$0xff]
        %v631 = vld [vmem:[%s440 + $0x8] sm:$0xff]
        %v632 = vld [vmem:[%s440 + $0x10] sm:$0xff]
        %v633 = vld [vmem:[%s440 + $0x18] sm:$0xff]
        %v634 = vld [vmem:[%s440 + $0x20] sm:$0xff]
        %v635 = vld [vmem:[%s440 + $0x28] sm:$0xff]
        %v636 = vld [vmem:[%s440 + $0x30] sm:$0xff]
        %v637 = vld [vmem:[%s440 + $0x38] sm:$0xff]
        %v638 = vld [vmem:[%s440 + $0x40] sm:$0xff]
        %v639 = vld [vmem:[%s440 + $0x48] sm:$0xff]
        %v640 = vld [vmem:[%s440 + $0x50] sm:$0xff]
        %v641 = vld [vmem:[%s440 + $0x58] sm:$0xff]
        %v642 = vld [vmem:[%s440 + $0x60] sm:$0xff]
        %v643 = vpack.c.bf16 %v631, %v630
        %v644 = vpack.c.bf16 %v633, %v632
        %v645 = vpack.c.bf16 %v635, %v634
        %v646 = vpack.c.bf16 %v637, %v636
        %v647 = vpack.c.bf16 %v639, %v638
        %v648 = vpack.c.bf16 %v641, %v640
        %v649 = vpack.c.bf16 %v642, %v642
        %v650 = vld [vmem:[%s4] sm:$0xf]
        %v651 = vld [vmem:[%s4 + $0x4] sm:$0xf]
        %v654 = vunpack.c.l.b16 %v650
        %v655 = vunpack.c.l.b16 %v651
        %v656 = vpack.c.b16 %v655, %v654
        %vm658 = vcmask 130048
        %v660 = vsel %vm658, %v643, 0
        %v663 = vsel %vm658, %v644, 0
        %v666 = vsel %vm658, %v645, 0
        %v669 = vsel %vm658, %v646, 0
        %v672 = vsel %vm658, %v647, 0
        %v675 = vsel %vm658, %v648, 0
        %v678 = vsel %vm658, %v649, 0
        %680 = vmatprep.subr.bf16.mxu0 0
        %681 = vmatpush1.bf16.msra.mxu0 %v656
        %682 = vmatprep.subr.bf16.mxu0 0
        %683 = vmatpush1.bf16.msra.mxu0 0
        %684 = vmatprep.subr.bf16.mxu0 0
        %685 = vmatpush1.bf16.msra.mxu0 0
        %686 = vmatprep.subr.bf16.mxu0 0
        %687 = vmatpush1.bf16.msra.mxu0 0
        %688 = vmatprep.subr.bf16.mxu0 0
        %689 = vmatpush1.bf16.msra.mxu0 0
        %690 = vmatprep.subr.bf16.mxu0 0
        %691 = vmatpush1.bf16.msra.mxu0 0
        %692 = vmatprep.subr.bf16.mxu0 0
        %693 = vmatpush1.bf16.msra.mxu0 0
        %694 = vmatprep.subr.bf16.mxu0 0
        %695 = vmatpush1.bf16.msra.mxu0 0
        %696 = vmatprep.subr.bf16.mxu0 0
        %697 = vmatpush1.bf16.msra.mxu0 0
        %698 = vmatprep.subr.bf16.mxu0 0
        %699 = vmatpush1.bf16.msra.mxu0 0
        %700 = vmatprep.subr.bf16.mxu0 0
        %701 = vmatpush1.bf16.msra.mxu0 0
        %702 = vmatprep.subr.bf16.mxu0 0
        %703 = vmatpush1.bf16.msra.mxu0 0
        %704 = vmatprep.subr.bf16.mxu0 0
        %705 = vmatpush1.bf16.msra.mxu0 0
        %706 = vmatprep.subr.bf16.mxu0 0
        %707 = vmatpush1.bf16.msra.mxu0 0
        %708 = vmatprep.subr.bf16.mxu0 0
        %709 = vmatpush1.bf16.msra.mxu0 0
        %710 = vmatprep.subr.bf16.mxu0 0
        %711 = vmatpush1.bf16.msra.mxu0 0
        %712 = vmatprep.mubr.bf16.mxu0 0
        %713 = vmatmul.mubr.bf16.gmra.mrb[0].mxu0 %v660
        %v714 = vpop.f32.mrb[0].mxu0
        %v715 = vadd.f32 0.0, %v714
        %v716 = vpop.f32.mrb[0].mxu0
        %v717 = vpop.f32.mrb[0].mxu0
        %v718 = vadd.f32 0.0, %v717
        %v719 = vpop.f32.mrb[0].mxu0
        %720 = vmatprep.mubr.bf16.mxu0 0
        %721 = vmatmul.mubr.bf16.gmra.mrb[0].mxu0 %v663
        %v722 = vpop.f32.mrb[0].mxu0
        %v723 = vadd.f32 0.0, %v722
        %v724 = vpop.f32.mrb[0].mxu0
        %v725 = vpop.f32.mrb[0].mxu0
        %v726 = vadd.f32 0.0, %v725
        %v727 = vpop.f32.mrb[0].mxu0
        %728 = vmatprep.mubr.bf16.mxu0 0
        %729 = vmatmul.mubr.bf16.gmra.mrb[0].mxu0 %v666
        %v730 = vpop.f32.mrb[0].mxu0
        %v731 = vadd.f32 0.0, %v730
        %v732 = vpop.f32.mrb[0].mxu0
        %v733 = vpop.f32.mrb[0].mxu0
        %v734 = vadd.f32 0.0, %v733
        %v735 = vpop.f32.mrb[0].mxu0
        %736 = vmatprep.mubr.bf16.mxu0 0
        %737 = vmatmul.mubr.bf16.gmra.mrb[0].mxu0 %v669
        %v738 = vpop.f32.mrb[0].mxu0
        %v739 = vadd.f32 0.0, %v738
        %v740 = vpop.f32.mrb[0].mxu0
        %v741 = vpop.f32.mrb[0].mxu0
        %v742 = vadd.f32 0.0, %v741
        %v743 = vpop.f32.mrb[0].mxu0
        %744 = vmatprep.mubr.bf16.mxu0 0
        %745 = vmatmul.mubr.bf16.gmra.mrb[0].mxu0 %v672
        %v746 = vpop.f32.mrb[0].mxu0
        %v747 = vadd.f32 0.0, %v746
        %v748 = vpop.f32.mrb[0].mxu0
        %v749 = vpop.f32.mrb[0].mxu0
        %v750 = vadd.f32 0.0, %v749
        %v751 = vpop.f32.mrb[0].mxu0
        %752 = vmatprep.mubr.bf16.mxu0 0
        %753 = vmatmul.mubr.bf16.gmra.mrb[0].mxu0 %v675
        %v754 = vpop.f32.mrb[0].mxu0
        %v755 = vadd.f32 0.0, %v754
        %v756 = vpop.f32.mrb[0].mxu0
        %v757 = vpop.f32.mrb[0].mxu0
        %v758 = vadd.f32 0.0, %v757
        %v759 = vpop.f32.mrb[0].mxu0
        %760 = vmatprep.mubr.bf16.mxu0 0
        %761 = vmatmul.mubr.bf16.gmra.mrb[0].mxu0 %v678
        %v762 = vpop.f32.mrb[0].mxu0
        %v763 = vadd.f32 0.0, %v762
        %v764 = vpop.f32.mrb[0].mxu0
        %v765 = vpop.f32.mrb[0].mxu0
        %v766 = vpop.f32.mrb[0].mxu0
        %767 = vdwg.mxu0
        %v768 = vadd.f32 %v617, %v715
        %v769 = vadd.f32 %v618, %v718
        %v770 = vadd.f32 %v619, %v723
        %v771 = vadd.f32 %v620, %v726
        %v772 = vadd.f32 %v621, %v731
        %v773 = vadd.f32 %v622, %v734
        %v774 = vadd.f32 %v623, %v739
        %v775 = vadd.f32 %v624, %v742
        %v776 = vadd.f32 %v625, %v747
        %v777 = vadd.f32 %v626, %v750
        %v778 = vadd.f32 %v627, %v755
        %v779 = vadd.f32 %v628, %v758
        %v780 = vadd.f32 %v629, %v763
        %v781 = vld [vmem:[%s454] sm:$0xff]
        %v782 = vld [vmem:[%s454 + $0x8] sm:$0xff]
        %v783 = vld [vmem:[%s454 + $0x10] sm:$0xff]
        %v784 = vld [vmem:[%s454 + $0x18] sm:$0xff]
        %v785 = vld [vmem:[%s454 + $0x20] sm:$0xff]
        %v786 = vld [vmem:[%s454 + $0x28] sm:$0xff]
        %v787 = vld [vmem:[%s454 + $0x30] sm:$0xff]
        %v788 = vld [vmem:[%s454 + $0x38] sm:$0xff]
        %v789 = vld [vmem:[%s454 + $0x40] sm:$0xff]
        %v790 = vld [vmem:[%s454 + $0x48] sm:$0xff]
        %v791 = vld [vmem:[%s454 + $0x50] sm:$0xff]
        %v792 = vld [vmem:[%s454 + $0x58] sm:$0xff]
        %v793 = vld [vmem:[%s454 + $0x60] sm:$0xff]
        %v794 = vpack.c.bf16 %v782, %v781
        %v795 = vpack.c.bf16 %v784, %v783
        %v796 = vpack.c.bf16 %v786, %v785
        %v797 = vpack.c.bf16 %v788, %v787
        %v798 = vpack.c.bf16 %v790, %v789
        %v799 = vpack.c.bf16 %v792, %v791
        %v800 = vpack.c.bf16 %v793, %v793
        %v801 = vld [vmem:[%s5] sm:$0xf]
        %v802 = vld [vmem:[%s5 + $0x4] sm:$0xf]
        %v803 = vld [vmem:[%s5 + $0x8] sm:$0xf]
        %v807 = vunpack.c.l.b16 %v801
        %v808 = vunpack.c.l.b16 %v802
        %v809 = vunpack.c.l.b16 %v803
        %v810 = vpack.c.b16 %v808, %v807
        %v811 = vpack.c.b16 %v809, %v809
        %vm813 = vcmask 195584
        %v815 = vsel %vm813, %v794, 0
        %v818 = vsel %vm813, %v795, 0
        %v821 = vsel %vm813, %v796, 0
        %v824 = vsel %vm813, %v797, 0
        %v827 = vsel %vm813, %v798, 0
        %v830 = vsel %vm813, %v799, 0
        %v833 = vsel %vm813, %v800, 0
        %vm835 = vcmask 1043456
        %v837 = vsel %vm835, %v811, 0
        %839 = vmatprep.subr.bf16.mxu0 0
        %840 = vmatpush1.bf16.msra.mxu0 %v810
        %841 = vmatprep.subr.bf16.mxu0 0
        %842 = vmatpush1.bf16.msra.mxu0 %v837
        %843 = vmatprep.subr.bf16.mxu0 0
        %844 = vmatpush1.bf16.msra.mxu0 0
        %845 = vmatprep.subr.bf16.mxu0 0
        %846 = vmatpush1.bf16.msra.mxu0 0
        %847 = vmatprep.subr.bf16.mxu0 0
        %848 = vmatpush1.bf16.msra.mxu0 0
        %849 = vmatprep.subr.bf16.mxu0 0
        %850 = vmatpush1.bf16.msra.mxu0 0
        %851 = vmatprep.subr.bf16.mxu0 0
        %852 = vmatpush1.bf16.msra.mxu0 0
        %853 = vmatprep.subr.bf16.mxu0 0
        %854 = vmatpush1.bf16.msra.mxu0 0
        %855 = vmatprep.subr.bf16.mxu0 0
        %856 = vmatpush1.bf16.msra.mxu0 0
        %857 = vmatprep.subr.bf16.mxu0 0
        %858 = vmatpush1.bf16.msra.mxu0 0
        %859 = vmatprep.subr.bf16.mxu0 0
        %860 = vmatpush1.bf16.msra.mxu0 0
        %861 = vmatprep.subr.bf16.mxu0 0
        %862 = vmatpush1.bf16.msra.mxu0 0
        %863 = vmatprep.subr.bf16.mxu0 0
        %864 = vmatpush1.bf16.msra.mxu0 0
        %865 = vmatprep.subr.bf16.mxu0 0
        %866 = vmatpush1.bf16.msra.mxu0 0
        %867 = vmatprep.subr.bf16.mxu0 0
        %868 = vmatpush1.bf16.msra.mxu0 0
        %869 = vmatprep.subr.bf16.mxu0 0
        %870 = vmatpush1.bf16.msra.mxu0 0
        %871 = vmatprep.mubr.bf16.mxu0 0
        %872 = vmatmul.mubr.bf16.gmra.mrb[0].mxu0 %v815
        %v873 = vpop.f32.mrb[0].mxu0
        %v874 = vadd.f32 0.0, %v873
        %v875 = vpop.f32.mrb[0].mxu0
        %v876 = vpop.f32.mrb[0].mxu0
        %v877 = vadd.f32 0.0, %v876
        %v878 = vpop.f32.mrb[0].mxu0
        %879 = vmatprep.mubr.bf16.mxu0 0
        %880 = vmatmul.mubr.bf16.gmra.mrb[0].mxu0 %v818
        %v881 = vpop.f32.mrb[0].mxu0
        %v882 = vadd.f32 0.0, %v881
        %v883 = vpop.f32.mrb[0].mxu0
        %v884 = vpop.f32.mrb[0].mxu0
        %v885 = vadd.f32 0.0, %v884
        %v886 = vpop.f32.mrb[0].mxu0
        %887 = vmatprep.mubr.bf16.mxu0 0
        %888 = vmatmul.mubr.bf16.gmra.mrb[0].mxu0 %v821
        %v889 = vpop.f32.mrb[0].mxu0
        %v890 = vadd.f32 0.0, %v889
        %v891 = vpop.f32.mrb[0].mxu0
        %v892 = vpop.f32.mrb[0].mxu0
        %v893 = vadd.f32 0.0, %v892
        %v894 = vpop.f32.mrb[0].mxu0
        %895 = vmatprep.mubr.bf16.mxu0 0
        %896 = vmatmul.mubr.bf16.gmra.mrb[0].mxu0 %v824
        %v897 = vpop.f32.mrb[0].mxu0
        %v898 = vadd.f32 0.0, %v897
        %v899 = vpop.f32.mrb[0].mxu0
        %v900 = vpop.f32.mrb[0].mxu0
        %v901 = vadd.f32 0.0, %v900
        %v902 = vpop.f32.mrb[0].mxu0
        %903 = vmatprep.mubr.bf16.mxu0 0
        %904 = vmatmul.mubr.bf16.gmra.mrb[0].mxu0 %v827
        %v905 = vpop.f32.mrb[0].mxu0
        %v906 = vadd.f32 0.0, %v905
        %v907 = vpop.f32.mrb[0].mxu0
        %v908 = vpop.f32.mrb[0].mxu0
        %v909 = vadd.f32 0.0, %v908
        %v910 = vpop.f32.mrb[0].mxu0
        %911 = vmatprep.mubr.bf16.mxu0 0
        %912 = vmatmul.mubr.bf16.gmra.mrb[0].mxu0 %v830
        %v913 = vpop.f32.mrb[0].mxu0
        %v914 = vadd.f32 0.0, %v913
        %v915 = vpop.f32.mrb[0].mxu0
        %v916 = vpop.f32.mrb[0].mxu0
        %v917 = vadd.f32 0.0, %v916
        %v918 = vpop.f32.mrb[0].mxu0
        %919 = vmatprep.mubr.bf16.mxu0 0
        %920 = vmatmul.mubr.bf16.gmra.mrb[0].mxu0 %v833
        %v921 = vpop.f32.mrb[0].mxu0
        %v922 = vadd.f32 0.0, %v921
        %v923 = vpop.f32.mrb[0].mxu0
        %v924 = vpop.f32.mrb[0].mxu0
        %v925 = vpop.f32.mrb[0].mxu0
        %926 = vdwg.mxu0
        %v927 = vadd.f32 %v768, %v874
        %v928 = vadd.f32 %v769, %v877
        %v929 = vadd.f32 %v770, %v882
        %v930 = vadd.f32 %v771, %v885
        %v931 = vadd.f32 %v772, %v890
        %v932 = vadd.f32 %v773, %v893
        %v933 = vadd.f32 %v774, %v898
        %v934 = vadd.f32 %v775, %v901
        %v935 = vadd.f32 %v776, %v906
        %v936 = vadd.f32 %v777, %v909
        %v937 = vadd.f32 %v778, %v914
        %v938 = vadd.f32 %v779, %v917
        %v939 = vadd.f32 %v780, %v922
        %v940 = vxor.u32 %v927, 2147483648
        %v941 = vxor.u32 %v928, 2147483648
        %v942 = vxor.u32 %v929, 2147483648
        %v943 = vxor.u32 %v930, 2147483648
        %v944 = vxor.u32 %v931, 2147483648
        %v945 = vxor.u32 %v932, 2147483648
        %v946 = vxor.u32 %v933, 2147483648
        %v947 = vxor.u32 %v934, 2147483648
        %v948 = vxor.u32 %v935, 2147483648
        %v949 = vxor.u32 %v936, 2147483648
        %v950 = vxor.u32 %v937, 2147483648
        %v951 = vxor.u32 %v938, 2147483648
        %v952 = vxor.u32 %v939, 2147483648
        %v953 = vmul.f32 %v940, 1.442695
        %v954 = vpow.pop %v953
        %v955 = vmul.f32 %v941, 1.442695
        %v956 = vpow.pop %v955
        %v957 = vmul.f32 %v942, 1.442695
        %v958 = vpow.pop %v957
        %v959 = vmul.f32 %v943, 1.442695
        %v960 = vpow.pop %v959
        %v961 = vmul.f32 %v944, 1.442695
        %v962 = vpow.pop %v961
        %v963 = vmul.f32 %v945, 1.442695
        %v964 = vpow.pop %v963
        %v965 = vmul.f32 %v946, 1.442695
        %v966 = vpow.pop %v965
        %v967 = vmul.f32 %v947, 1.442695
        %v968 = vpow.pop %v967
        %v969 = vmul.f32 %v948, 1.442695
        %v970 = vpow.pop %v969
        %v971 = vmul.f32 %v949, 1.442695
        %v972 = vpow.pop %v971
        %v973 = vmul.f32 %v950, 1.442695
        %v974 = vpow.pop %v973
        %v975 = vmul.f32 %v951, 1.442695
        %v976 = vpow.pop %v975
        %v977 = vmul.f32 %v952, 1.442695
        %v978 = vpow.pop %v977
        %v979 = vadd.f32 %v954, 1.0
        %v980 = vadd.f32 %v956, 1.0
        %v981 = vadd.f32 %v958, 1.0
        %v982 = vadd.f32 %v960, 1.0
        %v983 = vadd.f32 %v962, 1.0
        %v984 = vadd.f32 %v964, 1.0
        %v985 = vadd.f32 %v966, 1.0
        %v986 = vadd.f32 %v968, 1.0
        %v987 = vadd.f32 %v970, 1.0
        %v988 = vadd.f32 %v972, 1.0
        %v989 = vadd.f32 %v974, 1.0
        %v990 = vadd.f32 %v976, 1.0
        %v991 = vadd.f32 %v978, 1.0
        %v992 = vrcp.pop %v979
        %v993 = vmul.f32 1.0, %v992
        %v994 = vrcp.pop %v980
        %v995 = vmul.f32 1.0, %v994
        %v996 = vrcp.pop %v981
        %v997 = vmul.f32 1.0, %v996
        %v998 = vrcp.pop %v982
        %v999 = vmul.f32 1.0, %v998
        %v1000 = vrcp.pop %v983
        %v1001 = vmul.f32 1.0, %v1000
        %v1002 = vrcp.pop %v984
        %v1003 = vmul.f32 1.0, %v1002
        %v1004 = vrcp.pop %v985
        %v1005 = vmul.f32 1.0, %v1004
        %v1006 = vrcp.pop %v986
        %v1007 = vmul.f32 1.0, %v1006
        %v1008 = vrcp.pop %v987
        %v1009 = vmul.f32 1.0, %v1008
        %v1010 = vrcp.pop %v988
        %v1011 = vmul.f32 1.0, %v1010
        %v1012 = vrcp.pop %v989
        %v1013 = vmul.f32 1.0, %v1012
        %v1014 = vrcp.pop %v990
        %v1015 = vmul.f32 1.0, %v1014
        %v1016 = vrcp.pop %v991
        %v1017 = vmul.f32 1.0, %v1016
        %v1018 = vmul.f32 %v927, %v993
        %v1019 = vmul.f32 %v928, %v995
        %v1020 = vmul.f32 %v929, %v997
        %v1021 = vmul.f32 %v930, %v999
        %v1022 = vmul.f32 %v931, %v1001
        %v1023 = vmul.f32 %v932, %v1003
        %v1024 = vmul.f32 %v933, %v1005
        %v1025 = vmul.f32 %v934, %v1007
        %v1026 = vmul.f32 %v935, %v1009
        %v1027 = vmul.f32 %v936, %v1011
        %v1028 = vmul.f32 %v937, %v1013
        %v1029 = vmul.f32 %v938, %v1015
        %v1030 = vmul.f32 %v939, %v1017
        %v1031 = vpack.c.bf16 %v1019, %v1018
        %v1032 = vpack.c.bf16 %v1021, %v1020
        %v1033 = vpack.c.bf16 %v1023, %v1022
        %v1034 = vpack.c.bf16 %v1025, %v1024
        %v1035 = vpack.c.bf16 %v1027, %v1026
        %v1036 = vpack.c.bf16 %v1029, %v1028
        %v1037 = vpack.c.bf16 %v1030, %v1030
        %v1038 = vld [vmem:[%s6] sm:$0xf]
        %v1039 = vld [vmem:[%s6 + $0x4] sm:$0xf]
        %v1040 = vld [vmem:[%s6 + $0x8] sm:$0xf]
        %v1041 = vld [vmem:[%s6 + $0xc] sm:$0xf]
        %v1042 = vld [vmem:[%s6 + $0x10] sm:$0xf]
        %v1043 = vld [vmem:[%s6 + $0x14] sm:$0xf]
        %v1044 = vld [vmem:[%s6 + $0x18] sm:$0xf]
        %v1045 = vld [vmem:[%s6 + $0x1c] sm:$0xf]
        %v1046 = vld [vmem:[%s6 + $0x20] sm:$0xf]
        %v1047 = vld [vmem:[%s6 + $0x24] sm:$0xf]
        %v1048 = vld [vmem:[%s6 + $0x28] sm:$0xf]
        %v1049 = vld [vmem:[%s6 + $0x2c] sm:$0xf]
        %v1050 = vld [vmem:[%s6 + $0x30] sm:$0xf]
        %v1051 = vld [vmem:[%s6 + $0x34] sm:$0xf]
        %v1052 = vld [vmem:[%s6 + $0x38] sm:$0xf]
        %v1053 = vld [vmem:[%s6 + $0x3c] sm:$0xf]
        %v1054 = vld [vmem:[%s9 + $0x1] sm:$0x1]
        %v1055 = vlaneseq
        %v1056 = vshrl.u32 %v1055, 7
        %v1057 = vsub.s32 0, %v1056
        %v1058 = vrot.slane %v1054, %v1057
        %v1075 = vunpack.c.l.b16 %v1038
        %v1076 = vunpack.c.l.b16 %v1039
        %v1077 = vunpack.c.l.b16 %v1040
        %v1078 = vunpack.c.l.b16 %v1041
        %v1079 = vunpack.c.l.b16 %v1042
        %v1080 = vunpack.c.l.b16 %v1043
        %v1081 = vunpack.c.l.b16 %v1044
        %v1082 = vunpack.c.l.b16 %v1045
        %v1083 = vunpack.c.l.b16 %v1046
        %v1084 = vunpack.c.l.b16 %v1047
        %v1085 = vunpack.c.l.b16 %v1048
        %v1086 = vunpack.c.l.b16 %v1049
        %v1087 = vunpack.c.l.b16 %v1050
        %v1088 = vunpack.c.l.b16 %v1051
        %v1089 = vunpack.c.l.b16 %v1052
        %v1090 = vunpack.c.l.b16 %v1053
        %v1091 = vpack.c.b16 %v1076, %v1075
        %v1092 = vpack.c.b16 %v1078, %v1077
        %v1093 = vpack.c.b16 %v1080, %v1079
        %v1094 = vpack.c.b16 %v1082, %v1081
        %v1095 = vpack.c.b16 %v1084, %v1083
        %v1096 = vpack.c.b16 %v1086, %v1085
        %v1097 = vpack.c.b16 %v1088, %v1087
        %v1098 = vpack.c.b16 %v1090, %v1089
        %1107 = vmatprep.subr.bf16.mxu0 0
        %1108 = vmatpush1.bf16.msra.mxu0 %v1091
        %1109 = vmatprep.subr.bf16.mxu0 0
        %1110 = vmatpush1.bf16.msra.mxu0 %v1092
        %1111 = vmatprep.subr.bf16.mxu0 0
        %1112 = vmatpush1.bf16.msra.mxu0 %v1093
        %1113 = vmatprep.subr.bf16.mxu0 0
        %1114 = vmatpush1.bf16.msra.mxu0 %v1094
        %1115 = vmatprep.subr.bf16.mxu0 0
        %1116 = vmatpush1.bf16.msra.mxu0 %v1095
        %1117 = vmatprep.subr.bf16.mxu0 0
        %1118 = vmatpush1.bf16.msra.mxu0 %v1096
        %1119 = vmatprep.subr.bf16.mxu0 0
        %1120 = vmatpush1.bf16.msra.mxu0 %v1097
        %1121 = vmatprep.subr.bf16.mxu0 0
        %1122 = vmatpush1.bf16.msra.mxu0 %v1098
        %1123 = vmatprep.subr.bf16.mxu0 0
        %1124 = vmatpush1.bf16.msra.mxu0 0
        %1125 = vmatprep.subr.bf16.mxu0 0
        %1126 = vmatpush1.bf16.msra.mxu0 0
        %1127 = vmatprep.subr.bf16.mxu0 0
        %1128 = vmatpush1.bf16.msra.mxu0 0
        %1129 = vmatprep.subr.bf16.mxu0 0
        %1130 = vmatpush1.bf16.msra.mxu0 0
        %1131 = vmatprep.subr.bf16.mxu0 0
        %1132 = vmatpush1.bf16.msra.mxu0 0
        %1133 = vmatprep.subr.bf16.mxu0 0
        %1134 = vmatpush1.bf16.msra.mxu0 0
        %1135 = vmatprep.subr.bf16.mxu0 0
        %1136 = vmatpush1.bf16.msra.mxu0 0
        %1137 = vmatprep.subr.bf16.mxu0 0
        %1138 = vmatpush1.bf16.msra.mxu0 0
        %1139 = vmatprep.mubr.bf16.mxu0 0
        %1140 = vmatmul.mubr.bf16.gmra.mrb[0].mxu0 %v1031
        %v1141 = vpop.f32.mrb[0].mxu0
        %v1142 = vadd.f32 %v1058, %v1141
        %v1143 = vpop.f32.mrb[0].mxu0
        %v1144 = vpop.f32.mrb[0].mxu0
        %v1145 = vadd.f32 %v1058, %v1144
        %v1146 = vpop.f32.mrb[0].mxu0
        %1147 = vmatprep.mubr.bf16.mxu0 0
        %1148 = vmatmul.mubr.bf16.gmra.mrb[0].mxu0 %v1032
        %v1149 = vpop.f32.mrb[0].mxu0
        %v1150 = vadd.f32 %v1058, %v1149
        %v1151 = vpop.f32.mrb[0].mxu0
        %v1152 = vpop.f32.mrb[0].mxu0
        %v1153 = vadd.f32 %v1058, %v1152
        %v1154 = vpop.f32.mrb[0].mxu0
        %1155 = vmatprep.mubr.bf16.mxu0 0
        %1156 = vmatmul.mubr.bf16.gmra.mrb[0].mxu0 %v1033
        %v1157 = vpop.f32.mrb[0].mxu0
        %v1158 = vadd.f32 %v1058, %v1157
        %v1159 = vpop.f32.mrb[0].mxu0
        %v1160 = vpop.f32.mrb[0].mxu0
        %v1161 = vadd.f32 %v1058, %v1160
        %v1162 = vpop.f32.mrb[0].mxu0
        %1163 = vmatprep.mubr.bf16.mxu0 0
        %1164 = vmatmul.mubr.bf16.gmra.mrb[0].mxu0 %v1034
        %v1165 = vpop.f32.mrb[0].mxu0
        %v1166 = vadd.f32 %v1058, %v1165
        %v1167 = vpop.f32.mrb[0].mxu0
        %v1168 = vpop.f32.mrb[0].mxu0
        %v1169 = vadd.f32 %v1058, %v1168
        %v1170 = vpop.f32.mrb[0].mxu0
        %1171 = vmatprep.mubr.bf16.mxu0 0
        %1172 = vmatmul.mubr.bf16.gmra.mrb[0].mxu0 %v1035
        %v1173 = vpop.f32.mrb[0].mxu0
        %v1174 = vadd.f32 %v1058, %v1173
        %v1175 = vpop.f32.mrb[0].mxu0
        %v1176 = vpop.f32.mrb[0].mxu0
        %v1177 = vadd.f32 %v1058, %v1176
        %v1178 = vpop.f32.mrb[0].mxu0
        %1179 = vmatprep.mubr.bf16.mxu0 0
        %1180 = vmatmul.mubr.bf16.gmra.mrb[0].mxu0 %v1036
        %v1181 = vpop.f32.mrb[0].mxu0
        %v1182 = vadd.f32 %v1058, %v1181
        %v1183 = vpop.f32.mrb[0].mxu0
        %v1184 = vpop.f32.mrb[0].mxu0
        %v1185 = vadd.f32 %v1058, %v1184
        %v1186 = vpop.f32.mrb[0].mxu0
        %1187 = vmatprep.mubr.bf16.mxu0 0
        %1188 = vmatmul.mubr.bf16.gmra.mrb[0].mxu0 %v1037
        %v1189 = vpop.f32.mrb[0].mxu0
        %v1190 = vadd.f32 %v1058, %v1189
        %v1191 = vpop.f32.mrb[0].mxu0
        %v1192 = vpop.f32.mrb[0].mxu0
        %v1193 = vpop.f32.mrb[0].mxu0
        %1194 = vdwg.mxu0
        %v1195 = vxor.u32 %v1142, 2147483648
        %v1196 = vxor.u32 %v1145, 2147483648
        %v1197 = vxor.u32 %v1150, 2147483648
        %v1198 = vxor.u32 %v1153, 2147483648
        %v1199 = vxor.u32 %v1158, 2147483648
        %v1200 = vxor.u32 %v1161, 2147483648
        %v1201 = vxor.u32 %v1166, 2147483648
        %v1202 = vxor.u32 %v1169, 2147483648
        %v1203 = vxor.u32 %v1174, 2147483648
        %v1204 = vxor.u32 %v1177, 2147483648
        %v1205 = vxor.u32 %v1182, 2147483648
        %v1206 = vxor.u32 %v1185, 2147483648
        %v1207 = vxor.u32 %v1190, 2147483648
        %v1208 = vmul.f32 %v1195, 1.442695
        %v1209 = vpow.pop %v1208
        %v1210 = vmul.f32 %v1196, 1.442695
        %v1211 = vpow.pop %v1210
        %v1212 = vmul.f32 %v1197, 1.442695
        %v1213 = vpow.pop %v1212
        %v1214 = vmul.f32 %v1198, 1.442695
        %v1215 = vpow.pop %v1214
        %v1216 = vmul.f32 %v1199, 1.442695
        %v1217 = vpow.pop %v1216
        %v1218 = vmul.f32 %v1200, 1.442695
        %v1219 = vpow.pop %v1218
        %v1220 = vmul.f32 %v1201, 1.442695
        %v1221 = vpow.pop %v1220
        %v1222 = vmul.f32 %v1202, 1.442695
        %v1223 = vpow.pop %v1222
        %v1224 = vmul.f32 %v1203, 1.442695
        %v1225 = vpow.pop %v1224
        %v1226 = vmul.f32 %v1204, 1.442695
        %v1227 = vpow.pop %v1226
        %v1228 = vmul.f32 %v1205, 1.442695
        %v1229 = vpow.pop %v1228
        %v1230 = vmul.f32 %v1206, 1.442695
        %v1231 = vpow.pop %v1230
        %v1232 = vmul.f32 %v1207, 1.442695
        %v1233 = vpow.pop %v1232
        %v1234 = vadd.f32 %v1209, 1.0
        %v1235 = vadd.f32 %v1211, 1.0
        %v1236 = vadd.f32 %v1213, 1.0
        %v1237 = vadd.f32 %v1215, 1.0
        %v1238 = vadd.f32 %v1217, 1.0
        %v1239 = vadd.f32 %v1219, 1.0
        %v1240 = vadd.f32 %v1221, 1.0
        %v1241 = vadd.f32 %v1223, 1.0
        %v1242 = vadd.f32 %v1225, 1.0
        %v1243 = vadd.f32 %v1227, 1.0
        %v1244 = vadd.f32 %v1229, 1.0
        %v1245 = vadd.f32 %v1231, 1.0
        %v1246 = vadd.f32 %v1233, 1.0
        %v1247 = vrcp.pop %v1234
        %v1248 = vmul.f32 1.0, %v1247
        %v1249 = vrcp.pop %v1235
        %v1250 = vmul.f32 1.0, %v1249
        %v1251 = vrcp.pop %v1236
        %v1252 = vmul.f32 1.0, %v1251
        %v1253 = vrcp.pop %v1237
        %v1254 = vmul.f32 1.0, %v1253
        %v1255 = vrcp.pop %v1238
        %v1256 = vmul.f32 1.0, %v1255
        %v1257 = vrcp.pop %v1239
        %v1258 = vmul.f32 1.0, %v1257
        %v1259 = vrcp.pop %v1240
        %v1260 = vmul.f32 1.0, %v1259
        %v1261 = vrcp.pop %v1241
        %v1262 = vmul.f32 1.0, %v1261
        %v1263 = vrcp.pop %v1242
        %v1264 = vmul.f32 1.0, %v1263
        %v1265 = vrcp.pop %v1243
        %v1266 = vmul.f32 1.0, %v1265
        %v1267 = vrcp.pop %v1244
        %v1268 = vmul.f32 1.0, %v1267
        %v1269 = vrcp.pop %v1245
        %v1270 = vmul.f32 1.0, %v1269
        %v1271 = vrcp.pop %v1246
        %v1272 = vmul.f32 1.0, %v1271
        %v1273 = vmul.f32 %v1142, %v1248
        %v1274 = vmul.f32 %v1145, %v1250
        %v1275 = vmul.f32 %v1150, %v1252
        %v1276 = vmul.f32 %v1153, %v1254
        %v1277 = vmul.f32 %v1158, %v1256
        %v1278 = vmul.f32 %v1161, %v1258
        %v1279 = vmul.f32 %v1166, %v1260
        %v1280 = vmul.f32 %v1169, %v1262
        %v1281 = vmul.f32 %v1174, %v1264
        %v1282 = vmul.f32 %v1177, %v1266
        %v1283 = vmul.f32 %v1182, %v1268
        %v1284 = vmul.f32 %v1185, %v1270
        %v1285 = vmul.f32 %v1190, %v1272
        %v1286 = vpack.c.bf16 %v1274, %v1273
        %v1287 = vpack.c.bf16 %v1276, %v1275
        %v1288 = vpack.c.bf16 %v1278, %v1277
        %v1289 = vpack.c.bf16 %v1280, %v1279
        %v1290 = vpack.c.bf16 %v1282, %v1281
        %v1291 = vpack.c.bf16 %v1284, %v1283
        %v1292 = vpack.c.bf16 %v1285, %v1285
        %v1293 = vld [vmem:[%s7] sm:$0xf]
        %v1294 = vld [vmem:[%s7 + $0x4] sm:$0xf]
        %v1295 = vld [vmem:[%s7 + $0x8] sm:$0xf]
        %v1296 = vld [vmem:[%s7 + $0xc] sm:$0xf]
        %v1297 = vld [vmem:[%s7 + $0x10] sm:$0xf]
        %v1298 = vld [vmem:[%s7 + $0x14] sm:$0xf]
        %v1299 = vld [vmem:[%s7 + $0x18] sm:$0xf]
        %v1300 = vld [vmem:[%s7 + $0x1c] sm:$0xf]
        %v1301 = vld [vmem:[%s9 + $0x2] sm:$0x1]
        %v1302 = vlaneseq
        %v1303 = vshrl.u32 %v1302, 7
        %v1304 = vsub.s32 0, %v1303
        %v1305 = vrot.slane %v1301, %v1304
        %v1314 = vunpack.c.l.b16 %v1293
        %v1315 = vunpack.c.l.b16 %v1294
        %v1316 = vunpack.c.l.b16 %v1295
        %v1317 = vunpack.c.l.b16 %v1296
        %v1318 = vunpack.c.l.b16 %v1297
        %v1319 = vunpack.c.l.b16 %v1298
        %v1320 = vunpack.c.l.b16 %v1299
        %v1321 = vunpack.c.l.b16 %v1300
        %v1322 = vpack.c.b16 %v1315, %v1314
        %v1323 = vpack.c.b16 %v1317, %v1316
        %v1324 = vpack.c.b16 %v1319, %v1318
        %v1325 = vpack.c.b16 %v1321, %v1320
        %vm1330 = vcmask 523264
        %v1332 = vsel %vm1330, %v1286, 0
        %v1335 = vsel %vm1330, %v1287, 0
        %v1338 = vsel %vm1330, %v1288, 0
        %v1341 = vsel %vm1330, %v1289, 0
        %v1344 = vsel %vm1330, %v1290, 0
        %v1347 = vsel %vm1330, %v1291, 0
        %v1350 = vsel %vm1330, %v1292, 0
        %1352 = vmatprep.subr.bf16.mxu0 0
        %1353 = vmatpush1.bf16.msra.mxu0 %v1322
        %1354 = vmatprep.subr.bf16.mxu0 0
        %1355 = vmatpush1.bf16.msra.mxu0 %v1323
        %1356 = vmatprep.subr.bf16.mxu0 0
        %1357 = vmatpush1.bf16.msra.mxu0 %v1324
        %1358 = vmatprep.subr.bf16.mxu0 0
        %1359 = vmatpush1.bf16.msra.mxu0 %v1325
        %1360 = vmatprep.subr.bf16.mxu0 0
        %1361 = vmatpush1.bf16.msra.mxu0 0
        %1362 = vmatprep.subr.bf16.mxu0 0
        %1363 = vmatpush1.bf16.msra.mxu0 0
        %1364 = vmatprep.subr.bf16.mxu0 0
        %1365 = vmatpush1.bf16.msra.mxu0 0
        %1366 = vmatprep.subr.bf16.mxu0 0
        %1367 = vmatpush1.bf16.msra.mxu0 0
        %1368 = vmatprep.subr.bf16.mxu0 0
        %1369 = vmatpush1.bf16.msra.mxu0 0
        %1370 = vmatprep.subr.bf16.mxu0 0
        %1371 = vmatpush1.bf16.msra.mxu0 0
        %1372 = vmatprep.subr.bf16.mxu0 0
        %1373 = vmatpush1.bf16.msra.mxu0 0
        %1374 = vmatprep.subr.bf16.mxu0 0
        %1375 = vmatpush1.bf16.msra.mxu0 0
        %1376 = vmatprep.subr.bf16.mxu0 0
        %1377 = vmatpush1.bf16.msra.mxu0 0
        %1378 = vmatprep.subr.bf16.mxu0 0
        %1379 = vmatpush1.bf16.msra.mxu0 0
        %1380 = vmatprep.subr.bf16.mxu0 0
        %1381 = vmatpush1.bf16.msra.mxu0 0
        %1382 = vmatprep.subr.bf16.mxu0 0
        %1383 = vmatpush1.bf16.msra.mxu0 0
        %1384 = vmatprep.mubr.bf16.mxu0 0
        %1385 = vmatmul.mubr.bf16.gmra.mrb[0].mxu0 %v1332
        %v1386 = vpop.f32.mrb[0].mxu0
        %v1387 = vadd.f32 %v1305, %v1386
        %v1388 = vpop.f32.mrb[0].mxu0
        %v1389 = vpop.f32.mrb[0].mxu0
        %v1390 = vadd.f32 %v1305, %v1389
        %v1391 = vpop.f32.mrb[0].mxu0
        %1392 = vmatprep.mubr.bf16.mxu0 0
        %1393 = vmatmul.mubr.bf16.gmra.mrb[0].mxu0 %v1335
        %v1394 = vpop.f32.mrb[0].mxu0
        %v1395 = vadd.f32 %v1305, %v1394
        %v1396 = vpop.f32.mrb[0].mxu0
        %v1397 = vpop.f32.mrb[0].mxu0
        %v1398 = vadd.f32 %v1305, %v1397
        %v1399 = vpop.f32.mrb[0].mxu0
        %1400 = vmatprep.mubr.bf16.mxu0 0
        %1401 = vmatmul.mubr.bf16.gmra.mrb[0].mxu0 %v1338
        %v1402 = vpop.f32.mrb[0].mxu0
        %v1403 = vadd.f32 %v1305, %v1402
        %v1404 = vpop.f32.mrb[0].mxu0
        %v1405 = vpop.f32.mrb[0].mxu0
        %v1406 = vadd.f32 %v1305, %v1405
        %v1407 = vpop.f32.mrb[0].mxu0
        %1408 = vmatprep.mubr.bf16.mxu0 0
        %1409 = vmatmul.mubr.bf16.gmra.mrb[0].mxu0 %v1341
        %v1410 = vpop.f32.mrb[0].mxu0
        %v1411 = vadd.f32 %v1305, %v1410
        %v1412 = vpop.f32.mrb[0].mxu0
        %v1413 = vpop.f32.mrb[0].mxu0
        %v1414 = vadd.f32 %v1305, %v1413
        %v1415 = vpop.f32.mrb[0].mxu0
        %1416 = vmatprep.mubr.bf16.mxu0 0
        %1417 = vmatmul.mubr.bf16.gmra.mrb[0].mxu0 %v1344
        %v1418 = vpop.f32.mrb[0].mxu0
        %v1419 = vadd.f32 %v1305, %v1418
        %v1420 = vpop.f32.mrb[0].mxu0
        %v1421 = vpop.f32.mrb[0].mxu0
        %v1422 = vadd.f32 %v1305, %v1421
        %v1423 = vpop.f32.mrb[0].mxu0
        %1424 = vmatprep.mubr.bf16.mxu0 0
        %1425 = vmatmul.mubr.bf16.gmra.mrb[0].mxu0 %v1347
        %v1426 = vpop.f32.mrb[0].mxu0
        %v1427 = vadd.f32 %v1305, %v1426
        %v1428 = vpop.f32.mrb[0].mxu0
        %v1429 = vpop.f32.mrb[0].mxu0
        %v1430 = vadd.f32 %v1305, %v1429
        %v1431 = vpop.f32.mrb[0].mxu0
        %1432 = vmatprep.mubr.bf16.mxu0 0
        %1433 = vmatmul.mubr.bf16.gmra.mrb[0].mxu0 %v1350
        %v1434 = vpop.f32.mrb[0].mxu0
        %v1435 = vadd.f32 %v1305, %v1434
        %v1436 = vpop.f32.mrb[0].mxu0
        %v1437 = vpop.f32.mrb[0].mxu0
        %v1438 = vpop.f32.mrb[0].mxu0
        %1439 = vdwg.mxu0
        %v1440 = vxor.u32 %v1387, 2147483648
        %v1441 = vxor.u32 %v1390, 2147483648
        %v1442 = vxor.u32 %v1395, 2147483648
        %v1443 = vxor.u32 %v1398, 2147483648
        %v1444 = vxor.u32 %v1403, 2147483648
        %v1445 = vxor.u32 %v1406, 2147483648
        %v1446 = vxor.u32 %v1411, 2147483648
        %v1447 = vxor.u32 %v1414, 2147483648
        %v1448 = vxor.u32 %v1419, 2147483648
        %v1449 = vxor.u32 %v1422, 2147483648
        %v1450 = vxor.u32 %v1427, 2147483648
        %v1451 = vxor.u32 %v1430, 2147483648
        %v1452 = vxor.u32 %v1435, 2147483648
        %v1453 = vmul.f32 %v1440, 1.442695
        %v1454 = vpow.pop %v1453
        %v1455 = vmul.f32 %v1441, 1.442695
        %v1456 = vpow.pop %v1455
        %v1457 = vmul.f32 %v1442, 1.442695
        %v1458 = vpow.pop %v1457
        %v1459 = vmul.f32 %v1443, 1.442695
        %v1460 = vpow.pop %v1459
        %v1461 = vmul.f32 %v1444, 1.442695
        %v1462 = vpow.pop %v1461
        %v1463 = vmul.f32 %v1445, 1.442695
        %v1464 = vpow.pop %v1463
        %v1465 = vmul.f32 %v1446, 1.442695
        %v1466 = vpow.pop %v1465
        %v1467 = vmul.f32 %v1447, 1.442695
        %v1468 = vpow.pop %v1467
        %v1469 = vmul.f32 %v1448, 1.442695
        %v1470 = vpow.pop %v1469
        %v1471 = vmul.f32 %v1449, 1.442695
        %v1472 = vpow.pop %v1471
        %v1473 = vmul.f32 %v1450, 1.442695
        %v1474 = vpow.pop %v1473
        %v1475 = vmul.f32 %v1451, 1.442695
        %v1476 = vpow.pop %v1475
        %v1477 = vmul.f32 %v1452, 1.442695
        %v1478 = vpow.pop %v1477
        %v1479 = vadd.f32 %v1454, 1.0
        %v1480 = vadd.f32 %v1456, 1.0
        %v1481 = vadd.f32 %v1458, 1.0
        %v1482 = vadd.f32 %v1460, 1.0
        %v1483 = vadd.f32 %v1462, 1.0
        %v1484 = vadd.f32 %v1464, 1.0
        %v1485 = vadd.f32 %v1466, 1.0
        %v1486 = vadd.f32 %v1468, 1.0
        %v1487 = vadd.f32 %v1470, 1.0
        %v1488 = vadd.f32 %v1472, 1.0
        %v1489 = vadd.f32 %v1474, 1.0
        %v1490 = vadd.f32 %v1476, 1.0
        %v1491 = vadd.f32 %v1478, 1.0
        %v1492 = vrcp.pop %v1479
        %v1493 = vmul.f32 1.0, %v1492
        %v1494 = vrcp.pop %v1480
        %v1495 = vmul.f32 1.0, %v1494
        %v1496 = vrcp.pop %v1481
        %v1497 = vmul.f32 1.0, %v1496
        %v1498 = vrcp.pop %v1482
        %v1499 = vmul.f32 1.0, %v1498
        %v1500 = vrcp.pop %v1483
        %v1501 = vmul.f32 1.0, %v1500
        %v1502 = vrcp.pop %v1484
        %v1503 = vmul.f32 1.0, %v1502
        %v1504 = vrcp.pop %v1485
        %v1505 = vmul.f32 1.0, %v1504
        %v1506 = vrcp.pop %v1486
        %v1507 = vmul.f32 1.0, %v1506
        %v1508 = vrcp.pop %v1487
        %v1509 = vmul.f32 1.0, %v1508
        %v1510 = vrcp.pop %v1488
        %v1511 = vmul.f32 1.0, %v1510
        %v1512 = vrcp.pop %v1489
        %v1513 = vmul.f32 1.0, %v1512
        %v1514 = vrcp.pop %v1490
        %v1515 = vmul.f32 1.0, %v1514
        %v1516 = vrcp.pop %v1491
        %v1517 = vmul.f32 1.0, %v1516
        %v1518 = vmul.f32 %v1387, %v1493
        %v1519 = vmul.f32 %v1390, %v1495
        %v1520 = vmul.f32 %v1395, %v1497
        %v1521 = vmul.f32 %v1398, %v1499
        %v1522 = vmul.f32 %v1403, %v1501
        %v1523 = vmul.f32 %v1406, %v1503
        %v1524 = vmul.f32 %v1411, %v1505
        %v1525 = vmul.f32 %v1414, %v1507
        %v1526 = vmul.f32 %v1419, %v1509
        %v1527 = vmul.f32 %v1422, %v1511
        %v1528 = vmul.f32 %v1427, %v1513
        %v1529 = vmul.f32 %v1430, %v1515
        %v1530 = vmul.f32 %v1435, %v1517
        %v1531 = vpack.c.bf16 %v1519, %v1518
        %v1532 = vpack.c.bf16 %v1521, %v1520
        %v1533 = vpack.c.bf16 %v1523, %v1522
        %v1534 = vpack.c.bf16 %v1525, %v1524
        %v1535 = vpack.c.bf16 %v1527, %v1526
        %v1536 = vpack.c.bf16 %v1529, %v1528
        %v1537 = vpack.c.bf16 %v1530, %v1530
        %v1538 = vld [vmem:[%s8] sm:$0xf]
        %v1539 = vld [vmem:[%s8 + $0x4] sm:$0xf]
        %v1540 = vld [vmem:[%s8 + $0x8] sm:$0xf]
        %v1541 = vld [vmem:[%s8 + $0xc] sm:$0xf]
        %v1542 = vld [vmem:[%s8 + $0x10] sm:$0xf]
        %v1543 = vld [vmem:[%s8 + $0x14] sm:$0xf]
        %v1544 = vld [vmem:[%s8 + $0x18] sm:$0xf]
        %v1545 = vld [vmem:[%s8 + $0x1c] sm:$0xf]
        %v1546 = vld [vmem:[%s9 + $0x3] sm:$0x1]
        %v1547 = vlaneseq
        %v1548 = vshrl.u32 %v1547, 7
        %v1549 = vsub.s32 0, %v1548
        %v1550 = vrot.slane %v1546, %v1549
        %v1559 = vunpack.c.l.b16 %v1538
        %v1560 = vunpack.c.l.b16 %v1539
        %v1561 = vunpack.c.l.b16 %v1540
        %v1562 = vunpack.c.l.b16 %v1541
        %v1563 = vunpack.c.l.b16 %v1542
        %v1564 = vunpack.c.l.b16 %v1543
        %v1565 = vunpack.c.l.b16 %v1544
        %v1566 = vunpack.c.l.b16 %v1545
        %v1567 = vpack.c.b16 %v1560, %v1559
        %v1568 = vpack.c.b16 %v1562, %v1561
        %v1569 = vpack.c.b16 %v1564, %v1563
        %v1570 = vpack.c.b16 %v1566, %v1565
        %v1576 = vsel %vm1330, %v1531, 0
        %v1579 = vsel %vm1330, %v1532, 0
        %v1582 = vsel %vm1330, %v1533, 0
        %v1585 = vsel %vm1330, %v1534, 0
        %v1588 = vsel %vm1330, %v1535, 0
        %v1591 = vsel %vm1330, %v1536, 0
        %v1594 = vsel %vm1330, %v1537, 0
        %1596 = vmatprep.subr.bf16.mxu0 0
        %1597 = vmatpush1.bf16.msra.mxu0 %v1567
        %1598 = vmatprep.subr.bf16.mxu0 0
        %1599 = vmatpush1.bf16.msra.mxu0 %v1568
        %1600 = vmatprep.subr.bf16.mxu0 0
        %1601 = vmatpush1.bf16.msra.mxu0 %v1569
        %1602 = vmatprep.subr.bf16.mxu0 0
        %1603 = vmatpush1.bf16.msra.mxu0 %v1570
        %1604 = vmatprep.subr.bf16.mxu0 0
        %1605 = vmatpush1.bf16.msra.mxu0 0
        %1606 = vmatprep.subr.bf16.mxu0 0
        %1607 = vmatpush1.bf16.msra.mxu0 0
        %1608 = vmatprep.subr.bf16.mxu0 0
        %1609 = vmatpush1.bf16.msra.mxu0 0
        %1610 = vmatprep.subr.bf16.mxu0 0
        %1611 = vmatpush1.bf16.msra.mxu0 0
        %1612 = vmatprep.subr.bf16.mxu0 0
        %1613 = vmatpush1.bf16.msra.mxu0 0
        %1614 = vmatprep.subr.bf16.mxu0 0
        %1615 = vmatpush1.bf16.msra.mxu0 0
        %1616 = vmatprep.subr.bf16.mxu0 0
        %1617 = vmatpush1.bf16.msra.mxu0 0
        %1618 = vmatprep.subr.bf16.mxu0 0
        %1619 = vmatpush1.bf16.msra.mxu0 0
        %1620 = vmatprep.subr.bf16.mxu0 0
        %1621 = vmatpush1.bf16.msra.mxu0 0
        %1622 = vmatprep.subr.bf16.mxu0 0
        %1623 = vmatpush1.bf16.msra.mxu0 0
        %1624 = vmatprep.subr.bf16.mxu0 0
        %1625 = vmatpush1.bf16.msra.mxu0 0
        %1626 = vmatprep.subr.bf16.mxu0 0
        %1627 = vmatpush1.bf16.msra.mxu0 0
        %1628 = vmatprep.mubr.bf16.mxu0 0
        %1629 = vmatmul.mubr.bf16.gmra.mrb[0].mxu0 %v1576
        %v1630 = vpop.f32.mrb[0].mxu0
        %v1631 = vadd.f32 %v1550, %v1630
        %v1632 = vpop.f32.mrb[0].mxu0
        %v1633 = vpop.f32.mrb[0].mxu0
        %v1634 = vadd.f32 %v1550, %v1633
        %v1635 = vpop.f32.mrb[0].mxu0
        %1636 = vmatprep.mubr.bf16.mxu0 0
        %1637 = vmatmul.mubr.bf16.gmra.mrb[0].mxu0 %v1579
        %v1638 = vpop.f32.mrb[0].mxu0
        %v1639 = vadd.f32 %v1550, %v1638
        %v1640 = vpop.f32.mrb[0].mxu0
        %v1641 = vpop.f32.mrb[0].mxu0
        %v1642 = vadd.f32 %v1550, %v1641
        %v1643 = vpop.f32.mrb[0].mxu0
        %1644 = vmatprep.mubr.bf16.mxu0 0
        %1645 = vmatmul.mubr.bf16.gmra.mrb[0].mxu0 %v1582
        %v1646 = vpop.f32.mrb[0].mxu0
        %v1647 = vadd.f32 %v1550, %v1646
        %v1648 = vpop.f32.mrb[0].mxu0
        %v1649 = vpop.f32.mrb[0].mxu0
        %v1650 = vadd.f32 %v1550, %v1649
        %v1651 = vpop.f32.mrb[0].mxu0
        %1652 = vmatprep.mubr.bf16.mxu0 0
        %1653 = vmatmul.mubr.bf16.gmra.mrb[0].mxu0 %v1585
        %v1654 = vpop.f32.mrb[0].mxu0
        %v1655 = vadd.f32 %v1550, %v1654
        %v1656 = vpop.f32.mrb[0].mxu0
        %v1657 = vpop.f32.mrb[0].mxu0
        %v1658 = vadd.f32 %v1550, %v1657
        %v1659 = vpop.f32.mrb[0].mxu0
        %1660 = vmatprep.mubr.bf16.mxu0 0
        %1661 = vmatmul.mubr.bf16.gmra.mrb[0].mxu0 %v1588
        %v1662 = vpop.f32.mrb[0].mxu0
        %v1663 = vadd.f32 %v1550, %v1662
        %v1664 = vpop.f32.mrb[0].mxu0
        %v1665 = vpop.f32.mrb[0].mxu0
        %v1666 = vadd.f32 %v1550, %v1665
        %v1667 = vpop.f32.mrb[0].mxu0
        %1668 = vmatprep.mubr.bf16.mxu0 0
        %1669 = vmatmul.mubr.bf16.gmra.mrb[0].mxu0 %v1591
        %v1670 = vpop.f32.mrb[0].mxu0
        %v1671 = vadd.f32 %v1550, %v1670
        %v1672 = vpop.f32.mrb[0].mxu0
        %v1673 = vpop.f32.mrb[0].mxu0
        %v1674 = vadd.f32 %v1550, %v1673
        %v1675 = vpop.f32.mrb[0].mxu0
        %1676 = vmatprep.mubr.bf16.mxu0 0
        %1677 = vmatmul.mubr.bf16.gmra.mrb[0].mxu0 %v1594
        %v1678 = vpop.f32.mrb[0].mxu0
        %v1679 = vadd.f32 %v1550, %v1678
        %v1680 = vpop.f32.mrb[0].mxu0
        %v1681 = vpop.f32.mrb[0].mxu0
        %v1682 = vpop.f32.mrb[0].mxu0
        %1683 = vdwg.mxu0
        %v1684 = vlaneseq
        %v1685 = vand.u32 %v1684, 127
        %vm1686 = vcmp.ge.s32.totalorder %v1685, 3
        %v1687 = vsel %vm1686, %v1631, 0.0
        %v1688 = vsel %vm1686, %v1634, 0.0
        %v1689 = vsel %vm1686, %v1639, 0.0
        %v1690 = vsel %vm1686, %v1642, 0.0
        %v1691 = vsel %vm1686, %v1647, 0.0
        %v1692 = vsel %vm1686, %v1650, 0.0
        %v1693 = vsel %vm1686, %v1655, 0.0
        %v1694 = vsel %vm1686, %v1658, 0.0
        %v1695 = vsel %vm1686, %v1663, 0.0
        %v1696 = vsel %vm1686, %v1666, 0.0
        %v1697 = vsel %vm1686, %v1671, 0.0
        %v1698 = vsel %vm1686, %v1674, 0.0
        %v1699 = vsel %vm1686, %v1679, 0.0
        %v1700 = vmul.f32 %v1687, %v1687
        %v1701 = vmul.f32 %v1688, %v1688
        %v1702 = vmul.f32 %v1689, %v1689
        %v1703 = vmul.f32 %v1690, %v1690
        %v1704 = vmul.f32 %v1691, %v1691
        %v1705 = vmul.f32 %v1692, %v1692
        %v1706 = vmul.f32 %v1693, %v1693
        %v1707 = vmul.f32 %v1694, %v1694
        %v1708 = vmul.f32 %v1695, %v1695
        %v1709 = vmul.f32 %v1696, %v1696
        %v1710 = vmul.f32 %v1697, %v1697
        %v1711 = vmul.f32 %v1698, %v1698
        %v1712 = vmul.f32 %v1699, %v1699
        %vm1713 = vcmask 64512
        %v1714 = vsel %vm1713, %v1700, 0.0
        %1715 = vadd.xlane.f32.xlu0 %v1714
        %v1716 = vpop.xlane.xlu0 %1715
        %v1717 = vsel %vm1713, %v1701, 0.0
        %1718 = vadd.xlane.f32.xlu0 %v1717
        %v1719 = vpop.xlane.xlu0 %1718
        %v1720 = vsel %vm1713, %v1702, 0.0
        %1721 = vadd.xlane.f32.xlu0 %v1720
        %v1722 = vpop.xlane.xlu0 %1721
        %v1723 = vsel %vm1713, %v1703, 0.0
        %1724 = vadd.xlane.f32.xlu0 %v1723
        %v1725 = vpop.xlane.xlu0 %1724
        %v1726 = vsel %vm1713, %v1704, 0.0
        %1727 = vadd.xlane.f32.xlu0 %v1726
        %v1728 = vpop.xlane.xlu0 %1727
        %v1729 = vsel %vm1713, %v1705, 0.0
        %1730 = vadd.xlane.f32.xlu0 %v1729
        %v1731 = vpop.xlane.xlu0 %1730
        %v1732 = vsel %vm1713, %v1706, 0.0
        %1733 = vadd.xlane.f32.xlu0 %v1732
        %v1734 = vpop.xlane.xlu0 %1733
        %v1735 = vsel %vm1713, %v1707, 0.0
        %1736 = vadd.xlane.f32.xlu0 %v1735
        %v1737 = vpop.xlane.xlu0 %1736
        %v1738 = vsel %vm1713, %v1708, 0.0
        %1739 = vadd.xlane.f32.xlu0 %v1738
        %v1740 = vpop.xlane.xlu0 %1739
        %v1741 = vsel %vm1713, %v1709, 0.0
        %1742 = vadd.xlane.f32.xlu0 %v1741
        %v1743 = vpop.xlane.xlu0 %1742
        %v1744 = vsel %vm1713, %v1710, 0.0
        %1745 = vadd.xlane.f32.xlu0 %v1744
        %v1746 = vpop.xlane.xlu0 %1745
        %v1747 = vsel %vm1713, %v1711, 0.0
        %1748 = vadd.xlane.f32.xlu0 %v1747
        %v1749 = vpop.xlane.xlu0 %1748
        %v1750 = vsel %vm1713, %v1712, 0.0
        %1751 = vadd.xlane.f32.xlu0 %v1750
        %v1752 = vpop.xlane.xlu0 %1751
        %v1753 = vmax.f32 %v1716, 1e-24
        %v1754 = vmax.f32 %v1719, 1e-24
        %v1755 = vmax.f32 %v1722, 1e-24
        %v1756 = vmax.f32 %v1725, 1e-24
        %v1757 = vmax.f32 %v1728, 1e-24
        %v1758 = vmax.f32 %v1731, 1e-24
        %v1759 = vmax.f32 %v1734, 1e-24
        %v1760 = vmax.f32 %v1737, 1e-24
        %v1761 = vmax.f32 %v1740, 1e-24
        %v1762 = vmax.f32 %v1743, 1e-24
        %v1763 = vmax.f32 %v1746, 1e-24
        %v1764 = vmax.f32 %v1749, 1e-24
        %v1765 = vmax.f32 %v1752, 1e-24
        %v1766 = vrsqrt.pop %v1753
        %v1767 = vrsqrt.pop %v1754
        %v1768 = vrsqrt.pop %v1755
        %v1769 = vrsqrt.pop %v1756
        %v1770 = vrsqrt.pop %v1757
        %v1771 = vrsqrt.pop %v1758
        %v1772 = vrsqrt.pop %v1759
        %v1773 = vrsqrt.pop %v1760
        %v1774 = vrsqrt.pop %v1761
        %v1775 = vrsqrt.pop %v1762
        %v1776 = vrsqrt.pop %v1763
        %v1777 = vrsqrt.pop %v1764
        %v1778 = vrsqrt.pop %v1765
        %v1779 = vsel %vm1686, %v1766, 1.0
        %v1780 = vsel %vm1686, %v1767, 1.0
        %v1781 = vsel %vm1686, %v1768, 1.0
        %v1782 = vsel %vm1686, %v1769, 1.0
        %v1783 = vsel %vm1686, %v1770, 1.0
        %v1784 = vsel %vm1686, %v1771, 1.0
        %v1785 = vsel %vm1686, %v1772, 1.0
        %v1786 = vsel %vm1686, %v1773, 1.0
        %v1787 = vsel %vm1686, %v1774, 1.0
        %v1788 = vsel %vm1686, %v1775, 1.0
        %v1789 = vsel %vm1686, %v1776, 1.0
        %v1790 = vsel %vm1686, %v1777, 1.0
        %v1791 = vsel %vm1686, %v1778, 1.0
        %v1792 = vmul.f32 %v1631, %v1779
        %v1793 = vmul.f32 %v1634, %v1780
        %v1794 = vmul.f32 %v1639, %v1781
        %v1795 = vmul.f32 %v1642, %v1782
        %v1796 = vmul.f32 %v1647, %v1783
        %v1797 = vmul.f32 %v1650, %v1784
        %v1798 = vmul.f32 %v1655, %v1785
        %v1799 = vmul.f32 %v1658, %v1786
        %v1800 = vmul.f32 %v1663, %v1787
        %v1801 = vmul.f32 %v1666, %v1788
        %v1802 = vmul.f32 %v1671, %v1789
        %v1803 = vmul.f32 %v1674, %v1790
        %v1804 = vmul.f32 %v1679, %v1791
        %1805 = vst.msk [vmem:[%s417] sm:$0xff] %vm1713, %v1792
        %1806 = vst.msk [vmem:[%s417 + $0x8] sm:$0xff] %vm1713, %v1793
        %1807 = vst.msk [vmem:[%s417 + $0x10] sm:$0xff] %vm1713, %v1794
        %1808 = vst.msk [vmem:[%s417 + $0x18] sm:$0xff] %vm1713, %v1795
        %1809 = vst.msk [vmem:[%s417 + $0x20] sm:$0xff] %vm1713, %v1796
        %1810 = vst.msk [vmem:[%s417 + $0x28] sm:$0xff] %vm1713, %v1797
        %1811 = vst.msk [vmem:[%s417 + $0x30] sm:$0xff] %vm1713, %v1798
        %1812 = vst.msk [vmem:[%s417 + $0x38] sm:$0xff] %vm1713, %v1799
        %1813 = vst.msk [vmem:[%s417 + $0x40] sm:$0xff] %vm1713, %v1800
        %1814 = vst.msk [vmem:[%s417 + $0x48] sm:$0xff] %vm1713, %v1801
        %1815 = vst.msk [vmem:[%s417 + $0x50] sm:$0xff] %vm1713, %v1802
        %1816 = vst.msk [vmem:[%s417 + $0x58] sm:$0xff] %vm1713, %v1803
        %1817 = vst.msk [vmem:[%s417 + $0x60] sm:$0xff] %vm1713, %v1804
        %s1818 = sand.u32 %s254, 1
        %s1819 = sand.u32 %s254, 1
        %s1820 = smul.addr %s1819, 104
        %s1821 = scalar_lea.vmem [#allocation2], %s1820
        // Predicated region
        $region61: #{tpu_custom_call.1} parent=59 // pred_check
          %p1822 = pneg %p264
        $region62: #{tpu_custom_call.1} parent=59 // pred_check_branch
          %1824 = sbr.rel (%p1822) target = $region64
        $region63: #{tpu_custom_call.1} parent=59 // pred_region
          %s1825 = smul.u32 13, %s21
          %s1826 = ssub.s32 25, %s1825
          %p1827 = scmp.lt.s32.totalorder %s1826, 13
          %s1828 = scalar_select %p1827, %s1826, 13
          %s1829 = smul.u32 128, %s1828
          %p1830 = scmp.ne.s32.totalorder 0, %s1829
          %s1831 = smul.addr %s1825, 8
          %s1832 = scalar_lea.vmem %s10, %s1831
          // Predicated region
          $region65: #{tpu_custom_call.1} parent=63 // pred_check
            %p1833 = pneg %p1830
          $region66: #{tpu_custom_call.1} parent=63 // pred_check_branch
            %1835 = sbr.rel (%p1833) target = $region68
          $region67: #{tpu_custom_call.1} parent=63 // pred_region
            // Predicated region
            $region69: #{tpu_custom_call.1} parent=67 // pred_check
              _
            $region70: #{tpu_custom_call.1} parent=67 // pred_check_branch
              %1837 = sbr.rel (0) target = $region72
            $region71: #{tpu_custom_call.1} parent=67 // pred_region
              // Predicated region
              $region91: #{tpu_custom_call.1} parent=71 // pred_check
                _
              $region92: #{tpu_custom_call.1} parent=71 // pred_check_branch
                %1911 = sbr.rel (0) target = $region94
              $region93: #{tpu_custom_call.1} parent=71 // pred_region
                %s1912 = sdiv.u32.pop %s1828, 13
                %s1913 = srem.u32.pop %s1828, 13
                // While loop
                $region95: #{tpu_custom_call.1} parent=93 // loop_pre_header
                  _
                $region96: #{tpu_custom_call.1} parent=93 // loop_header
                  %s1915 = sphi 0, %s1917
                  %p1916 = scmp.ge.s32.totalorder %s1915, %s1912
                  %s1920 = sphi 0, %s1951
                  %s1921 = sphi %s1821, %s1954
                  %s1922 = sphi %s1832, %s1955
                $region97: #{tpu_custom_call.1} parent=93 // loop_header_branch
                  %1919 = sbr.rel (%p1916) target = $region101
                $region98: #{tpu_custom_call.1} parent=93 // loop_body
                  %v1923 = vld [vmem:[%s1921] sm:$0xff]
                  %1924 = vst [vmem:[%s1922] sm:$0xff] %v1923
                  %v1925 = vld [vmem:[%s1921 + $0x8] sm:$0xff]
                  %1926 = vst [vmem:[%s1922 + $0x8] sm:$0xff] %v1925
                  %v1927 = vld [vmem:[%s1921 + $0x10] sm:$0xff]
                  %1928 = vst [vmem:[%s1922 + $0x10] sm:$0xff] %v1927
                  %v1929 = vld [vmem:[%s1921 + $0x18] sm:$0xff]
                  %1930 = vst [vmem:[%s1922 + $0x18] sm:$0xff] %v1929
                  %v1931 = vld [vmem:[%s1921 + $0x20] sm:$0xff]
                  %1932 = vst [vmem:[%s1922 + $0x20] sm:$0xff] %v1931
                  %v1933 = vld [vmem:[%s1921 + $0x28] sm:$0xff]
                  %1934 = vst [vmem:[%s1922 + $0x28] sm:$0xff] %v1933
                  %v1935 = vld [vmem:[%s1921 + $0x30] sm:$0xff]
                  %1936 = vst [vmem:[%s1922 + $0x30] sm:$0xff] %v1935
                  %v1937 = vld [vmem:[%s1921 + $0x38] sm:$0xff]
                  %1938 = vst [vmem:[%s1922 + $0x38] sm:$0xff] %v1937
                  %v1939 = vld [vmem:[%s1921 + $0x40] sm:$0xff]
                  %1940 = vst [vmem:[%s1922 + $0x40] sm:$0xff] %v1939
                  %v1941 = vld [vmem:[%s1921 + $0x48] sm:$0xff]
                  %1942 = vst [vmem:[%s1922 + $0x48] sm:$0xff] %v1941
                  %v1943 = vld [vmem:[%s1921 + $0x50] sm:$0xff]
                  %1944 = vst [vmem:[%s1922 + $0x50] sm:$0xff] %v1943
                  %v1945 = vld [vmem:[%s1921 + $0x58] sm:$0xff]
                  %1946 = vst [vmem:[%s1922 + $0x58] sm:$0xff] %v1945
                  %v1947 = vld [vmem:[%s1921 + $0x60] sm:$0xff]
                  %1948 = vst [vmem:[%s1922 + $0x60] sm:$0xff] %v1947
                  %s1949 = sadd.s32 1, %s1920
                  %p1950 = scmp.ge.s32.totalorder %s1949, %s1912
                  %s1951 = scalar_select %p1950, 0, %s1949
                  %s1952 = smul.u32 %s1951, 104
                  %s1953 = smul.u32 %s1951, 104
                  %s1954 = scalar_lea.vmem %s1821, %s1952 [#allocation2]
                  %s1955 = scalar_lea.vmem %s1832, %s1953
                $region99: #{tpu_custom_call.1} parent=93 // loop_footer
                  %s1917 = sadd.s32 %s1915, 1
                $region100: #{tpu_custom_call.1} parent=93 // loop_footer_branch
                  %1914 = sbr.rel target = $region96
                $region101: #{tpu_custom_call.1} parent=93 // loop_exit
                  _
                %s1956 = sdiv.u32.pop %s1828, 13
                %s1957 = srem.u32.pop %s1828, 13
                %s1958 = smul.u32 %s1956, 13
                %s1959 = smul.u32 8, %s1958
                %s1960 = scalar_lea.vmem %s1821, %s1959 [#allocation2]
                %s1961 = smul.u32 8, %s1958
                %s1962 = scalar_lea.vmem %s1832, %s1961
                // While loop
                $region102: #{tpu_custom_call.1} parent=93 // loop_pre_header
                  _
                $region103: #{tpu_custom_call.1} parent=93 // loop_header
                  %s1964 = sphi 0, %s1966
                  %p1965 = scmp.ge.s32.totalorder %s1964, %s1957
                  %s1969 = sphi 0, %s1976
                  %s1970 = sphi %s1960, %s1979
                  %s1971 = sphi %s1962, %s1980
                $region104: #{tpu_custom_call.1} parent=93 // loop_header_branch
                  %1968 = sbr.rel (%p1965) target = $region108
                $region105: #{tpu_custom_call.1} parent=93 // loop_body
                  %v1972 = vld [vmem:[%s1970] sm:$0xff]
                  %1973 = vst [vmem:[%s1971] sm:$0xff] %v1972
                  %s1974 = sadd.s32 1, %s1969
                  %p1975 = scmp.ge.s32.totalorder %s1974, %s1957
                  %s1976 = scalar_select %p1975, 0, %s1974
                  %s1977 = smul.u32 %s1976, 8
                  %s1978 = smul.u32 %s1976, 8
                  %s1979 = scalar_lea.vmem %s1960, %s1977 [#allocation2]
                  %s1980 = scalar_lea.vmem %s1962, %s1978
                $region106: #{tpu_custom_call.1} parent=93 // loop_footer
                  %s1966 = sadd.s32 %s1964, 1
                $region107: #{tpu_custom_call.1} parent=93 // loop_footer_branch
                  %1963 = sbr.rel target = $region103
                $region108: #{tpu_custom_call.1} parent=93 // loop_exit
                  _
              $region94: #{tpu_custom_call.1} parent=71 // pred_fallthru
                _
              // Predicated region
              $region109: #{tpu_custom_call.1} parent=71 // pred_check
                _
              $region110: #{tpu_custom_call.1} parent=71 // pred_check_branch
                %1982 = sbr.rel target = $region112
              $region111: #{tpu_custom_call.1} parent=71 // pred_region
                _
              $region112: #{tpu_custom_call.1} parent=71 // pred_fallthru
                _
            $region72: #{tpu_custom_call.1} parent=67 // pred_fallthru
              _
            // Predicated region
            $region73: #{tpu_custom_call.1} parent=67 // pred_check
              _
            $region74: #{tpu_custom_call.1} parent=67 // pred_check_branch
              %1839 = sbr.rel target = $region76
            $region75: #{tpu_custom_call.1} parent=67 // pred_region
              %s1841 = sdiv.u32.pop %s1828, 13
              %s1842 = srem.u32.pop %s1828, 13
              // While loop
              $region77: #{tpu_custom_call.1} parent=75 // loop_pre_header
                _
              $region78: #{tpu_custom_call.1} parent=75 // loop_header
                %s1844 = sphi 0, %s1846
                %p1845 = scmp.ge.s32.totalorder %s1844, %s1841
                %s1849 = sphi 0, %s1880
                %s1850 = sphi %s1821, %s1883
                %s1851 = sphi %s1832, %s1884
              $region79: #{tpu_custom_call.1} parent=75 // loop_header_branch
                %1848 = sbr.rel (%p1845) target = $region83
              $region80: #{tpu_custom_call.1} parent=75 // loop_body
                %v1852 = vld [vmem:[%s1850] sm:$0xff]
                %1853 = vst [vmem:[%s1851] sm:$0xff] %v1852
                %v1854 = vld [vmem:[%s1850 + $0x8] sm:$0xff]
                %1855 = vst [vmem:[%s1851 + $0x8] sm:$0xff] %v1854
                %v1856 = vld [vmem:[%s1850 + $0x10] sm:$0xff]
                %1857 = vst [vmem:[%s1851 + $0x10] sm:$0xff] %v1856
                %v1858 = vld [vmem:[%s1850 + $0x18] sm:$0xff]
                %1859 = vst [vmem:[%s1851 + $0x18] sm:$0xff] %v1858
                %v1860 = vld [vmem:[%s1850 + $0x20] sm:$0xff]
                %1861 = vst [vmem:[%s1851 + $0x20] sm:$0xff] %v1860
                %v1862 = vld [vmem:[%s1850 + $0x28] sm:$0xff]
                %1863 = vst [vmem:[%s1851 + $0x28] sm:$0xff] %v1862
                %v1864 = vld [vmem:[%s1850 + $0x30] sm:$0xff]
                %1865 = vst [vmem:[%s1851 + $0x30] sm:$0xff] %v1864
                %v1866 = vld [vmem:[%s1850 + $0x38] sm:$0xff]
                %1867 = vst [vmem:[%s1851 + $0x38] sm:$0xff] %v1866
                %v1868 = vld [vmem:[%s1850 + $0x40] sm:$0xff]
                %1869 = vst [vmem:[%s1851 + $0x40] sm:$0xff] %v1868
                %v1870 = vld [vmem:[%s1850 + $0x48] sm:$0xff]
                %1871 = vst [vmem:[%s1851 + $0x48] sm:$0xff] %v1870
                %v1872 = vld [vmem:[%s1850 + $0x50] sm:$0xff]
                %1873 = vst [vmem:[%s1851 + $0x50] sm:$0xff] %v1872
                %v1874 = vld [vmem:[%s1850 + $0x58] sm:$0xff]
                %1875 = vst [vmem:[%s1851 + $0x58] sm:$0xff] %v1874
                %v1876 = vld [vmem:[%s1850 + $0x60] sm:$0xff]
                %1877 = vst [vmem:[%s1851 + $0x60] sm:$0xff] %v1876
                %s1878 = sadd.s32 1, %s1849
                %p1879 = scmp.ge.s32.totalorder %s1878, %s1841
                %s1880 = scalar_select %p1879, 0, %s1878
                %s1881 = smul.u32 %s1880, 104
                %s1882 = smul.u32 %s1880, 104
                %s1883 = scalar_lea.vmem %s1821, %s1881 [#allocation2]
                %s1884 = scalar_lea.vmem %s1832, %s1882
              $region81: #{tpu_custom_call.1} parent=75 // loop_footer
                %s1846 = sadd.s32 %s1844, 1
              $region82: #{tpu_custom_call.1} parent=75 // loop_footer_branch
                %1843 = sbr.rel target = $region78
              $region83: #{tpu_custom_call.1} parent=75 // loop_exit
                _
              %s1885 = sdiv.u32.pop %s1828, 13
              %s1886 = srem.u32.pop %s1828, 13
              %s1887 = smul.u32 %s1885, 13
              %s1888 = smul.u32 8, %s1887
              %s1889 = scalar_lea.vmem %s1821, %s1888 [#allocation2]
              %s1890 = smul.u32 8, %s1887
              %s1891 = scalar_lea.vmem %s1832, %s1890
              // While loop
              $region84: #{tpu_custom_call.1} parent=75 // loop_pre_header
                _
              $region85: #{tpu_custom_call.1} parent=75 // loop_header
                %s1893 = sphi 0, %s1895
                %p1894 = scmp.ge.s32.totalorder %s1893, %s1886
                %s1898 = sphi 0, %s1905
                %s1899 = sphi %s1889, %s1908
                %s1900 = sphi %s1891, %s1909
              $region86: #{tpu_custom_call.1} parent=75 // loop_header_branch
                %1897 = sbr.rel (%p1894) target = $region90
              $region87: #{tpu_custom_call.1} parent=75 // loop_body
                %v1901 = vld [vmem:[%s1899] sm:$0xff]
                %1902 = vst [vmem:[%s1900] sm:$0xff] %v1901
                %s1903 = sadd.s32 1, %s1898
                %p1904 = scmp.ge.s32.totalorder %s1903, %s1886
                %s1905 = scalar_select %p1904, 0, %s1903
                %s1906 = smul.u32 %s1905, 8
                %s1907 = smul.u32 %s1905, 8
                %s1908 = scalar_lea.vmem %s1889, %s1906 [#allocation2]
                %s1909 = scalar_lea.vmem %s1891, %s1907
              $region88: #{tpu_custom_call.1} parent=75 // loop_footer
                %s1895 = sadd.s32 %s1893, 1
              $region89: #{tpu_custom_call.1} parent=75 // loop_footer_branch
                %1892 = sbr.rel target = $region85
              $region90: #{tpu_custom_call.1} parent=75 // loop_exit
                _
            $region76: #{tpu_custom_call.1} parent=67 // pred_fallthru
              _
          $region68: #{tpu_custom_call.1} parent=63 // pred_fallthru
            _
          %1983 = vnop
        $region64: #{tpu_custom_call.1} parent=59 // pred_fallthru
          _
      $region60: #{tpu_custom_call.1} parent=5 // pred_fallthru
        _
      %p1984 = scmp.le.s32.totalorder 2, %s16
      // Predicated region
      $region113: #{tpu_custom_call.1} parent=5 // pred_check
        %p1985 = pneg %p1984
      $region114: #{tpu_custom_call.1} parent=5 // pred_check_branch
        %1987 = sbr.rel (%p1985) target = $region116
      $region115: #{tpu_custom_call.1} parent=5 // pred_region
        %s1988 = ssub.s32 %s16, 2
        // Predicated region
        $region117: #{tpu_custom_call.1} parent=115 // pred_check
          %p1989 = pneg %p270
        $region118: #{tpu_custom_call.1} parent=115 // pred_check_branch
          %1991 = sbr.rel (%p1989) target = $region120
        $region119: #{tpu_custom_call.1} parent=115 // pred_region
          %s1992 = sand.u32 %s255, 1
          %s1993 = sand.u32 %s255, 1
          %s1994 = smul.addr %s1993, 104
          %s1995 = scalar_lea.vmem [#allocation2], %s1994
        $region120: #{tpu_custom_call.1} parent=115 // pred_fallthru
          _
      $region116: #{tpu_custom_call.1} parent=5 // pred_fallthru
        _
    $region6: #{tpu_custom_call.1} parent=1 // loop_footer
      %s20 = sadd.s32 1, %s16
    $region7: #{tpu_custom_call.1} parent=1 // loop_footer_branch
      %15 = sbr.rel target = $region3
    $region8: #{tpu_custom_call.1} parent=1 // loop_exit
      _

</llo_original>
